<compile_context>
chip_gen: v7x
topology: tpu7x:2x2x1
jax: 0.10.0
libtpu: 0.0.40
codegen_flags: <defaults>
</compile_context>

<pallas_src>
import math

import jax
import jax.numpy as jnp
from jax.experimental import pallas as pl
from jax.experimental.pallas import tpu as pltpu

N_ACTIONS = 22
N_OBSERVATIONS = 8     # len(state) in the original script; small & deterministic
HIDDEN = 128
LANE = 128             # TPU lane width; final-layer output dim is padded to this
MAX_BATCH_TILE = 4096  # soft cap; overhead (not VMEM) is the real constraint here
MIN_ROWS_PER_TC = 256  # split into 2 tiles (one per v7x TC) once B >= 2 * this
SMALL_BATCH = 64       # below this, plain XLA beats the kernel's fixed cost


def _round_up(x, m):
    return (x + m - 1) // m * m


def dqn_kernel(x_ref, w1_ref, b1_ref, w2_ref, b2_ref, w3_ref, b3_ref, o_ref):
    """Fused 3-layer MLP forward for one batch tile.

    Layer 1 runs on the VPU (K=8 is too thin for the MXU); layers 2/3 run on the
    MXU with f32 accumulation.  W3/b3 arrive zero-padded to LANE columns so the
    output store is a lane-dense 128-wide vst.
    """
    tb = x_ref.shape[0]
    n_obs = x_ref.shape[1]

    xf = x_ref[...].astype(jnp.float32)                       # (tb, n_obs)

    # ---- layer 1 on the VPU: unrolled broadcast-MACs, bias as accumulator init ----
    h1 = jnp.broadcast_to(b1_ref[...].astype(jnp.float32), (tb, w1_ref.shape[1]))
    for k in range(n_obs):                                     # n_obs = 8, fully unrolled
        h1 = h1 + xf[:, k:k + 1] * w1_ref[k:k + 1, :].astype(jnp.float32)
    h1 = jnp.maximum(h1, 0.0).astype(w2_ref.dtype)

    # ---- layers 2/3 on the MXU (bf16 operands by default, f32 accumulation) ----
    h2 = (jnp.dot(h1, w2_ref[...], preferred_element_type=jnp.float32)
          + b2_ref[...].astype(jnp.float32))
    h2 = jnp.maximum(h2, 0.0).astype(w3_ref.dtype)

    o_ref[...] = (
        jnp.dot(h2, w3_ref[...], preferred_element_type=jnp.float32)
        + b3_ref[...].astype(jnp.float32)
    ).astype(o_ref.dtype)


def prepare_dqn_params(params, compute_dtype=jnp.bfloat16):
    """One-time param prep (call at init and at target-network sync, NOT per step).

    Zero-pads the final layer to LANE output columns (lane-dense stores) and casts
    everything to the compute dtype so the forward path does no per-call copies.
    """
    w1, b1, w2, b2, w3, b3 = params
    n_out = w3.shape[1]
    pad = _round_up(n_out, LANE) - n_out
    if pad:
        w3 = jnp.pad(w3, ((0, 0), (0, pad)))
        b3 = jnp.pad(b3, ((0, 0), (0, pad)))
    return tuple(a.astype(compute_dtype) for a in (w1, b1, w2, b2, w3, b3))


def dqn_forward(x, prepared, *, n_actions=N_ACTIONS, small_batch_threshold=SMALL_BATCH):
    """Batched DQN forward.  `prepared` comes from prepare_dqn_params().

    Tiny batches (online action selection) use plain XLA; replay-sized batches use
    the fused Pallas kernel with 1-2 grid steps.  Output dtype == compute dtype.
    """
    w1, b1, w2, b2, w3, b3 = prepared
    B, n_obs = x.shape
    n_out_pad = w3.shape[1]
    compute_dtype = w1.dtype

    # Online path: at B <= threshold the kernel is pure fixed cost (dispatch +
    # grid prologue + padded-row compute); plain XLA is strictly faster.
    if B <= small_batch_threshold:
        xc = x.astype(compute_dtype)
        h1 = jnp.maximum(xc @ w1 + b1, 0.0)
        h2 = jnp.maximum(h1 @ w2 + b2, 0.0)
        return (h2 @ w3 + b3)[:, :n_actions]

    # Batch tiling: 1 big tile, or 2 tiles once the batch is large enough that the
    # "parallel" axis can usefully land on both v7x TensorCores (near-free elsewhere).
    b8 = _round_up(B, 8)
    num_tiles = 2 if b8 >= 2 * MIN_ROWS_PER_TC else 1
    tb = min(_round_up(pl.cdiv(b8, num_tiles), 8), MAX_BATCH_TILE)
    grid_n = pl.cdiv(b8, tb)
    b_pad = grid_n * tb
    if b_pad != B:
        x = jnp.pad(x, ((0, b_pad - B), (0, 0)))
    x = x.astype(compute_dtype)

    itemsize = jnp.dtype(compute_dtype).itemsize
    flops = 2 * b_pad * (n_obs * HIDDEN + HIDDEN * HIDDEN + HIDDEN * n_out_pad)
    bytes_accessed = (
        x.size * itemsize
        + sum(a.size * itemsize for a in (w1, b1, w2, b2, w3, b3))
        + b_pad * n_out_pad * itemsize
    )

    # Weights/biases: constant index_map -> same block every grid step (VMEM-resident).
    resident = lambda a: pl.BlockSpec(a.shape, lambda i: (0, 0))

    out = pl.pallas_call(
        dqn_kernel,
        out_shape=jax.ShapeDtypeStruct((b_pad, n_out_pad), compute_dtype),
        grid=(grid_n,),
        in_specs=[
            pl.BlockSpec((tb, n_obs), lambda i: (i, 0)),   # x: tiled over batch
            resident(w1), resident(b1),
            resident(w2), resident(b2),
            resident(w3), resident(b3),
        ],
        out_specs=pl.BlockSpec((tb, n_out_pad), lambda i: (i, 0)),
        compiler_params=pltpu.CompilerParams(
            dimension_semantics=("parallel",),  # shard batch tiles across v7x's 2 TCs
        ),
        cost_estimate=pl.CostEstimate(
            flops=flops, transcendentals=0, bytes_accessed=bytes_accessed
        ),
    )(x, w1, b1, w2, b2, w3, b3)

    return out[:B, :n_actions]


def init_dqn_params(key, n_observations, n_actions):
    """Deterministic init mimicking PyTorch nn.Linear default: U(-1/sqrt(fan_in), +)."""
    def linear(key, fan_in, fan_out):
        kw, kb = jax.random.split(key)
        bound = 1.0 / math.sqrt(fan_in)
        w = jax.random.uniform(kw, (fan_in, fan_out), jnp.float32, -bound, bound)
        b = jax.random.uniform(kb, (1, fan_out), jnp.float32, -bound, bound)
        return w, b

    k1, k2, k3 = jax.random.split(key, 3)
    w1, b1 = linear(k1, n_observations, HIDDEN)
    w2, b2 = linear(k2, HIDDEN, HIDDEN)
    w3, b3 = linear(k3, HIDDEN, n_actions)
    return (w1, b1, w2, b2, w3, b3)


def dqn_reference(x, params):
    """Pure-JAX f32 reference matching PyTorch semantics."""
    w1, b1, w2, b2, w3, b3 = params
    h1 = jnp.maximum(x @ w1 + b1, 0.0)
    h2 = jnp.maximum(h1 @ w2 + b2, 0.0)
    return h2 @ w3 + b3


if __name__ == "__main__":
    key = jax.random.PRNGKey(0)
    k_params, k_x_small, k_x_mid, k_x_big = jax.random.split(key, 4)

    params = init_dqn_params(k_params, N_OBSERVATIONS, N_ACTIONS)
    prepared_bf16 = prepare_dqn_params(params)                       # default bf16
    prepared_f32 = prepare_dqn_params(params, compute_dtype=jnp.float32)

    # Online action-selection-sized batch: dispatched to plain XLA (no kernel).
    x_small = jax.random.normal(k_x_small, (2, N_OBSERVATIONS), dtype=jnp.float32)
    out_small = jax.block_until_ready(dqn_forward(x_small, prepared_f32))
    ref_small = dqn_reference(x_small, params)
    assert out_small.shape == (2, N_ACTIONS), out_small.shape
    assert jnp.allclose(out_small, ref_small, atol=1e-5, rtol=1e-5), "small-batch mismatch"

    # Mid-size batch (single-tile kernel path, non-multiple-of-8 padding exercised), f32.
    x_mid = jax.random.normal(k_x_mid, (300, N_OBSERVATIONS), dtype=jnp.float32)
    out_mid = jax.block_until_ready(dqn_forward(x_mid, prepared_f32))
    ref_mid = dqn_reference(x_mid, params)
    assert out_mid.shape == (300, N_ACTIONS), out_mid.shape
    assert jnp.allclose(out_mid, ref_mid, atol=1e-4, rtol=1e-4), "mid-batch f32 mismatch"

    # Replay-buffer-sized batch: 2 tiles of 512 rows (both v7x TCs), f32 check.
    x_big = jax.random.normal(k_x_big, (1024, N_OBSERVATIONS), dtype=jnp.float32)
    out_big = jax.block_until_ready(dqn_forward(x_big, prepared_f32))
    ref_big = dqn_reference(x_big, params)
    assert out_big.shape == (1024, N_ACTIONS), out_big.shape
    assert jnp.allclose(out_big, ref_big, atol=1e-4, rtol=1e-4), "big-batch f32 mismatch"

    # Default bf16-operand path (all generations); f32 accumulation keeps error small.
    out_bf16 = jax.block_until_ready(dqn_forward(x_big, prepared_bf16))
    assert out_bf16.dtype == jnp.bfloat16, out_bf16.dtype
    assert jnp.allclose(out_bf16.astype(jnp.float32), ref_big, atol=5e-2, rtol=5e-2), \
        "bf16-path mismatch"

    print("KERNEL_OK")
</pallas_src>

<mosaic_0001>
module attributes {stable_mosaic.version = 11 : i64} {
  func.func @dqn_kernel(%arg0: i32, %arg1: memref<304x8xf32, #tpu.memory_space<vmem>>, %arg2: memref<8x128xf32, #tpu.memory_space<vmem>>, %arg3: memref<1x128xf32, #tpu.memory_space<vmem>>, %arg4: memref<128x128xf32, #tpu.memory_space<vmem>>, %arg5: memref<1x128xf32, #tpu.memory_space<vmem>>, %arg6: memref<128x128xf32, #tpu.memory_space<vmem>>, %arg7: memref<1x128xf32, #tpu.memory_space<vmem>>, %arg8: memref<304x128xf32, #tpu.memory_space<vmem>>) attributes {dimension_semantics = [#tpu.dimension_semantics<parallel>], iteration_bounds = array<i64: 1>, scalar_prefetch = 0 : i64, scratch_operands = 0 : i64, tpu.core_type = #tpu.core_type<tc>, window_params = [{transform_indices = @transform_0, window_bounds = array<i64: 304, 8>}, {pipeline_mode = #tpu.pipeline_mode<synchronous>, transform_indices = @transform_1, window_bounds = array<i64: 8, 128>}, {pipeline_mode = #tpu.pipeline_mode<synchronous>, transform_indices = @transform_2, window_bounds = array<i64: 1, 128>}, {pipeline_mode = #tpu.pipeline_mode<synchronous>, transform_indices = @transform_3, window_bounds = array<i64: 128, 128>}, {pipeline_mode = #tpu.pipeline_mode<synchronous>, transform_indices = @transform_4, window_bounds = array<i64: 1, 128>}, {pipeline_mode = #tpu.pipeline_mode<synchronous>, transform_indices = @transform_5, window_bounds = array<i64: 128, 128>}, {pipeline_mode = #tpu.pipeline_mode<synchronous>, transform_indices = @transform_6, window_bounds = array<i64: 1, 128>}, {transform_indices = @transform_7, window_bounds = array<i64: 304, 128>}]} {
    %c0 = arith.constant 0 : index
    %c0_0 = arith.constant 0 : index
    %0 = vector.load %arg1[%c0, %c0_0] : memref<304x8xf32, #tpu.memory_space<vmem>>, vector<304x8xf32>
    %c0_1 = arith.constant 0 : index
    %c0_2 = arith.constant 0 : index
    %1 = vector.load %arg3[%c0_1, %c0_2] : memref<1x128xf32, #tpu.memory_space<vmem>>, vector<1x128xf32>
    %2 = vector.shape_cast %1 : vector<1x128xf32> to vector<1x128xf32>
    %3 = vector.broadcast %2 : vector<1x128xf32> to vector<304x128xf32>
    %4 = vector.extract_strided_slice %0 {offsets = [0, 0], sizes = [304, 1], strides = [1, 1]} : vector<304x8xf32> to vector<304x1xf32>
    %c0_3 = arith.constant 0 : index
    %c0_4 = arith.constant 0 : index
    %5 = vector.load %arg2[%c0_3, %c0_4] : memref<8x128xf32, #tpu.memory_space<vmem>>, vector<1x128xf32>
    %6 = vector.broadcast %4 : vector<304x1xf32> to vector<304x128xf32>
    %7 = vector.broadcast %5 : vector<1x128xf32> to vector<304x128xf32>
    %8 = arith.mulf %6, %7 : vector<304x128xf32>
    %9 = arith.addf %3, %8 : vector<304x128xf32>
    %10 = vector.extract_strided_slice %0 {offsets = [0, 1], sizes = [304, 1], strides = [1, 1]} : vector<304x8xf32> to vector<304x1xf32>
    %c1 = arith.constant 1 : index
    %c0_5 = arith.constant 0 : index
    %11 = vector.load %arg2[%c1, %c0_5] : memref<8x128xf32, #tpu.memory_space<vmem>>, vector<1x128xf32>
    %12 = vector.broadcast %10 : vector<304x1xf32> to vector<304x128xf32>
    %13 = vector.broadcast %11 : vector<1x128xf32> to vector<304x128xf32>
    %14 = arith.mulf %12, %13 : vector<304x128xf32>
    %15 = arith.addf %9, %14 : vector<304x128xf32>
    %16 = vector.extract_strided_slice %0 {offsets = [0, 2], sizes = [304, 1], strides = [1, 1]} : vector<304x8xf32> to vector<304x1xf32>
    %c2 = arith.constant 2 : index
    %c0_6 = arith.constant 0 : index
    %17 = vector.load %arg2[%c2, %c0_6] : memref<8x128xf32, #tpu.memory_space<vmem>>, vector<1x128xf32>
    %18 = vector.broadcast %16 : vector<304x1xf32> to vector<304x128xf32>
    %19 = vector.broadcast %17 : vector<1x128xf32> to vector<304x128xf32>
    %20 = arith.mulf %18, %19 : vector<304x128xf32>
    %21 = arith.addf %15, %20 : vector<304x128xf32>
    %22 = vector.extract_strided_slice %0 {offsets = [0, 3], sizes = [304, 1], strides = [1, 1]} : vector<304x8xf32> to vector<304x1xf32>
    %c3 = arith.constant 3 : index
    %c0_7 = arith.constant 0 : index
    %23 = vector.load %arg2[%c3, %c0_7] : memref<8x128xf32, #tpu.memory_space<vmem>>, vector<1x128xf32>
    %24 = vector.broadcast %22 : vector<304x1xf32> to vector<304x128xf32>
    %25 = vector.broadcast %23 : vector<1x128xf32> to vector<304x128xf32>
    %26 = arith.mulf %24, %25 : vector<304x128xf32>
    %27 = arith.addf %21, %26 : vector<304x128xf32>
    %28 = vector.extract_strided_slice %0 {offsets = [0, 4], sizes = [304, 1], strides = [1, 1]} : vector<304x8xf32> to vector<304x1xf32>
    %c4 = arith.constant 4 : index
    %c0_8 = arith.constant 0 : index
    %29 = vector.load %arg2[%c4, %c0_8] : memref<8x128xf32, #tpu.memory_space<vmem>>, vector<1x128xf32>
    %30 = vector.broadcast %28 : vector<304x1xf32> to vector<304x128xf32>
    %31 = vector.broadcast %29 : vector<1x128xf32> to vector<304x128xf32>
    %32 = arith.mulf %30, %31 : vector<304x128xf32>
    %33 = arith.addf %27, %32 : vector<304x128xf32>
    %34 = vector.extract_strided_slice %0 {offsets = [0, 5], sizes = [304, 1], strides = [1, 1]} : vector<304x8xf32> to vector<304x1xf32>
    %c5 = arith.constant 5 : index
    %c0_9 = arith.constant 0 : index
    %35 = vector.load %arg2[%c5, %c0_9] : memref<8x128xf32, #tpu.memory_space<vmem>>, vector<1x128xf32>
    %36 = vector.broadcast %34 : vector<304x1xf32> to vector<304x128xf32>
    %37 = vector.broadcast %35 : vector<1x128xf32> to vector<304x128xf32>
    %38 = arith.mulf %36, %37 : vector<304x128xf32>
    %39 = arith.addf %33, %38 : vector<304x128xf32>
    %40 = vector.extract_strided_slice %0 {offsets = [0, 6], sizes = [304, 1], strides = [1, 1]} : vector<304x8xf32> to vector<304x1xf32>
    %c6 = arith.constant 6 : index
    %c0_10 = arith.constant 0 : index
    %41 = vector.load %arg2[%c6, %c0_10] : memref<8x128xf32, #tpu.memory_space<vmem>>, vector<1x128xf32>
    %42 = vector.broadcast %40 : vector<304x1xf32> to vector<304x128xf32>
    %43 = vector.broadcast %41 : vector<1x128xf32> to vector<304x128xf32>
    %44 = arith.mulf %42, %43 : vector<304x128xf32>
    %45 = arith.addf %39, %44 : vector<304x128xf32>
    %46 = vector.extract_strided_slice %0 {offsets = [0, 7], sizes = [304, 1], strides = [1, 1]} : vector<304x8xf32> to vector<304x1xf32>
    %c7 = arith.constant 7 : index
    %c0_11 = arith.constant 0 : index
    %47 = vector.load %arg2[%c7, %c0_11] : memref<8x128xf32, #tpu.memory_space<vmem>>, vector<1x128xf32>
    %48 = vector.broadcast %46 : vector<304x1xf32> to vector<304x128xf32>
    %49 = vector.broadcast %47 : vector<1x128xf32> to vector<304x128xf32>
    %50 = arith.mulf %48, %49 : vector<304x128xf32>
    %51 = arith.addf %45, %50 : vector<304x128xf32>
    %cst = arith.constant 0.000000e+00 : f32
    %52 = vector.broadcast %cst : f32 to vector<304x128xf32>
    %53 = arith.maximumf %51, %52 : vector<304x128xf32>
    %c0_12 = arith.constant 0 : index
    %c0_13 = arith.constant 0 : index
    %54 = vector.load %arg4[%c0_12, %c0_13] : memref<128x128xf32, #tpu.memory_space<vmem>>, vector<128x128xf32>
    %cst_14 = arith.constant dense<0.000000e+00> : vector<304x128xf32>
    %55 = tpu.matmul %53, %54, %cst_14 {dimension_numbers = #tpu.dot_dimension_numbers<[1], [0], [0], [1], [0, 0, 1, 1], [], []>} : vector<304x128xf32>, vector<128x128xf32>, vector<304x128xf32> -> vector<304x128xf32>
    %c0_15 = arith.constant 0 : index
    %c0_16 = arith.constant 0 : index
    %56 = vector.load %arg5[%c0_15, %c0_16] : memref<1x128xf32, #tpu.memory_space<vmem>>, vector<1x128xf32>
    %57 = vector.broadcast %56 : vector<1x128xf32> to vector<304x128xf32>
    %58 = arith.addf %55, %57 : vector<304x128xf32>
    %cst_17 = arith.constant 0.000000e+00 : f32
    %59 = vector.broadcast %cst_17 : f32 to vector<304x128xf32>
    %60 = arith.maximumf %58, %59 : vector<304x128xf32>
    %c0_18 = arith.constant 0 : index
    %c0_19 = arith.constant 0 : index
    %61 = vector.load %arg6[%c0_18, %c0_19] : memref<128x128xf32, #tpu.memory_space<vmem>>, vector<128x128xf32>
    %cst_20 = arith.constant dense<0.000000e+00> : vector<304x128xf32>
    %62 = tpu.matmul %60, %61, %cst_20 {dimension_numbers = #tpu.dot_dimension_numbers<[1], [0], [0], [1], [0, 0, 1, 1], [], []>} : vector<304x128xf32>, vector<128x128xf32>, vector<304x128xf32> -> vector<304x128xf32>
    %c0_21 = arith.constant 0 : index
    %c0_22 = arith.constant 0 : index
    %63 = vector.load %arg7[%c0_21, %c0_22] : memref<1x128xf32, #tpu.memory_space<vmem>>, vector<1x128xf32>
    %64 = vector.broadcast %63 : vector<1x128xf32> to vector<304x128xf32>
    %65 = arith.addf %62, %64 : vector<304x128xf32>
    %c0_23 = arith.constant 0 : index
    %c0_24 = arith.constant 0 : index
    %66 = vector.load %arg8[%c0_23, %c0_24] : memref<304x128xf32, #tpu.memory_space<vmem>>, vector<304x128xf32>
    tpu.vector_store %arg8[%c0_23, %c0_24], %65 {strides = array<i32>} : memref<304x128xf32, #tpu.memory_space<vmem>>, vector<304x128xf32>,
    return
  }
  func.func @transform_0(%arg0: i32) -> (i32, i32) {
    %c0_i32 = arith.constant 0 : i32
    %c0_i32_0 = arith.constant 0 : i32
    return %arg0, %c0_i32 : i32, i32
  }
  func.func @transform_1(%arg0: i32) -> (i32, i32) {
    %c0_i32 = arith.constant 0 : i32
    %c0_i32_0 = arith.constant 0 : i32
    %c0_i32_1 = arith.constant 0 : i32
    return %c0_i32, %c0_i32_0 : i32, i32
  }
  func.func @transform_2(%arg0: i32) -> (i32, i32) {
    %c0_i32 = arith.constant 0 : i32
    %c0_i32_0 = arith.constant 0 : i32
    %c0_i32_1 = arith.constant 0 : i32
    return %c0_i32, %c0_i32_0 : i32, i32
  }
  func.func @transform_3(%arg0: i32) -> (i32, i32) {
    %c0_i32 = arith.constant 0 : i32
    %c0_i32_0 = arith.constant 0 : i32
    %c0_i32_1 = arith.constant 0 : i32
    return %c0_i32, %c0_i32_0 : i32, i32
  }
  func.func @transform_4(%arg0: i32) -> (i32, i32) {
    %c0_i32 = arith.constant 0 : i32
    %c0_i32_0 = arith.constant 0 : i32
    %c0_i32_1 = arith.constant 0 : i32
    return %c0_i32, %c0_i32_0 : i32, i32
  }
  func.func @transform_5(%arg0: i32) -> (i32, i32) {
    %c0_i32 = arith.constant 0 : i32
    %c0_i32_0 = arith.constant 0 : i32
    %c0_i32_1 = arith.constant 0 : i32
    return %c0_i32, %c0_i32_0 : i32, i32
  }
  func.func @transform_6(%arg0: i32) -> (i32, i32) {
    %c0_i32 = arith.constant 0 : i32
    %c0_i32_0 = arith.constant 0 : i32
    %c0_i32_1 = arith.constant 0 : i32
    return %c0_i32, %c0_i32_0 : i32, i32
  }
  func.func @transform_7(%arg0: i32) -> (i32, i32) {
    %c0_i32 = arith.constant 0 : i32
    %c0_i32_0 = arith.constant 0 : i32
    return %arg0, %c0_i32 : i32, i32
  }
}

</mosaic_0001>

<llo_original>
// kernel: tpu_custom_call.1
$region0: #{tpu_custom_call.1}
  #allocation0 [shape = 'u32[]', space=smem, size = 0x4, offset = 0x4, fixed_abs, tag = 'smem constant byte address 0x4 - core index']
  #allocation1 [shape = 'u32[144,128]{1,0:T(1,128)}', space=vmem, size = 0x12000, scoped, tag = 'internal scratch']
  %s0 = inlined_call_operand.vmem [shape: f32[304,8], index: 0, kind: input, shape index: {}]
  %s1 = inlined_call_operand.vmem [shape: f32[8,128], index: 1, kind: input, shape index: {}]
  %s2 = inlined_call_operand.vmem [shape: f32[1,128], index: 2, kind: input, shape index: {}]
  %s3 = inlined_call_operand.vmem [shape: f32[128,128], index: 3, kind: input, shape index: {}]
  %s4 = inlined_call_operand.vmem [shape: f32[1,128], index: 4, kind: input, shape index: {}]
  %s5 = inlined_call_operand.vmem [shape: f32[128,128], index: 5, kind: input, shape index: {}]
  %s6 = inlined_call_operand.vmem [shape: f32[1,128], index: 6, kind: input, shape index: {}]
  %s7 = inlined_call_operand.hbm [shape: f32[304,128], index: 7, kind: output, shape index: {}]
  %s8 = sld [smem:[#allocation0]]
  $region38: #{tpu_custom_call.1} parent=0
    _
  %s10 = ssub.s32 1, %s8
  %s11 = scalar_select 0, %s10, %s8
  $region1: #{tpu_custom_call.1} parent=0
    #allocation2 [shape = 'u8[155648]{0}', space=vmem, size = 0x26000, scoped, tag = 'output window, operand 0, single buffered']
    #allocation3 [shape = 's32[1]{0}', space=sflag, size = 0x4, scoped, tag = 'scoped memory for tpu_custom_call.1']
    %12 = vsyncpa [#allocation3], 0
    // Predicated region
    $region2: #{tpu_custom_call.1} parent=1 // pred_check
      _
    $region3: #{tpu_custom_call.1} parent=1 // pred_check_branch
      %14 = sbr.rel (0) target = $region5
    $region4: #{tpu_custom_call.1} parent=1 // pred_region
      _
    $region5: #{tpu_custom_call.1} parent=1 // pred_fallthru
      _
    // Predicated region
    $region6: #{tpu_custom_call.1} parent=1 // pred_check
      _
    $region7: #{tpu_custom_call.1} parent=1 // pred_check_branch
      %16 = sbr.rel (0) target = $region9
    $region8: #{tpu_custom_call.1} parent=1 // pred_region
      _
    $region9: #{tpu_custom_call.1} parent=1 // pred_fallthru
      _
    // Predicated region
    $region10: #{tpu_custom_call.1} parent=1 // pred_check
      _
    $region11: #{tpu_custom_call.1} parent=1 // pred_check_branch
      %18 = sbr.rel (0) target = $region13
    $region12: #{tpu_custom_call.1} parent=1 // pred_region
      _
    $region13: #{tpu_custom_call.1} parent=1 // pred_fallthru
      _
    // Predicated region
    $region14: #{tpu_custom_call.1} parent=1 // pred_check
      _
    $region15: #{tpu_custom_call.1} parent=1 // pred_check_branch
      %20 = sbr.rel (0) target = $region17
    $region16: #{tpu_custom_call.1} parent=1 // pred_region
      _
    $region17: #{tpu_custom_call.1} parent=1 // pred_fallthru
      _
    // Predicated region
    $region18: #{tpu_custom_call.1} parent=1 // pred_check
      _
    $region19: #{tpu_custom_call.1} parent=1 // pred_check_branch
      %22 = sbr.rel (0) target = $region21
    $region20: #{tpu_custom_call.1} parent=1 // pred_region
      _
    $region21: #{tpu_custom_call.1} parent=1 // pred_fallthru
      _
    // Predicated region
    $region22: #{tpu_custom_call.1} parent=1 // pred_check
      _
    $region23: #{tpu_custom_call.1} parent=1 // pred_check_branch
      %24 = sbr.rel (0) target = $region25
    $region24: #{tpu_custom_call.1} parent=1 // pred_region
      _
    $region25: #{tpu_custom_call.1} parent=1 // pred_fallthru
      _
    // Predicated region
    $region26: #{tpu_custom_call.1} parent=1 // pred_check
      _
    $region27: #{tpu_custom_call.1} parent=1 // pred_check_branch
      %26 = sbr.rel (0) target = $region29
    $region28: #{tpu_custom_call.1} parent=1 // pred_region
      _
    $region29: #{tpu_custom_call.1} parent=1 // pred_fallthru
      _
    %v27 = vld [vmem:[%s0] sm:$0xff]
    %v28 = vld [vmem:[%s0 + $0x8] sm:$0xff]
    %v29 = vld [vmem:[%s0 + $0x10] sm:$0xff]
    %v30 = vld [vmem:[%s0 + $0x18] sm:$0xff]
    %v31 = vld [vmem:[%s0 + $0x20] sm:$0xff]
    %v32 = vld [vmem:[%s0 + $0x28] sm:$0xff]
    %v33 = vld [vmem:[%s0 + $0x30] sm:$0xff]
    %v34 = vld [vmem:[%s0 + $0x38] sm:$0xff]
    %v35 = vld [vmem:[%s0 + $0x40] sm:$0xff]
    %v36 = vld [vmem:[%s0 + $0x48] sm:$0xff]
    %v37 = vld [vmem:[%s0 + $0x50] sm:$0xff]
    %v38 = vld [vmem:[%s0 + $0x58] sm:$0xff]
    %v39 = vld [vmem:[%s0 + $0x60] sm:$0xff]
    %v40 = vld [vmem:[%s0 + $0x68] sm:$0xff]
    %v41 = vld [vmem:[%s0 + $0x70] sm:$0xff]
    %v42 = vld [vmem:[%s0 + $0x78] sm:$0xff]
    %v43 = vld [vmem:[%s0 + $0x80] sm:$0xff]
    %v44 = vld [vmem:[%s0 + $0x88] sm:$0xff]
    %v45 = vld [vmem:[%s0 + $0x90] sm:$0xff]
    %v46 = vld [vmem:[%s0 + $0x98] sm:$0xff]
    %v47 = vld [vmem:[%s0 + $0xa0] sm:$0xff]
    %v48 = vld [vmem:[%s0 + $0xa8] sm:$0xff]
    %v49 = vld [vmem:[%s0 + $0xb0] sm:$0xff]
    %v50 = vld [vmem:[%s0 + $0xb8] sm:$0xff]
    %v51 = vld [vmem:[%s0 + $0xc0] sm:$0xff]
    %v52 = vld [vmem:[%s0 + $0xc8] sm:$0xff]
    %v53 = vld [vmem:[%s0 + $0xd0] sm:$0xff]
    %v54 = vld [vmem:[%s0 + $0xd8] sm:$0xff]
    %v55 = vld [vmem:[%s0 + $0xe0] sm:$0xff]
    %v56 = vld [vmem:[%s0 + $0xe8] sm:$0xff]
    %v57 = vld [vmem:[%s0 + $0xf0] sm:$0xff]
    %v58 = vld [vmem:[%s0 + $0xf8] sm:$0xff]
    %v59 = vld [vmem:[%s0 + $0x100] sm:$0xff]
    %v60 = vld [vmem:[%s0 + $0x108] sm:$0xff]
    %v61 = vld [vmem:[%s0 + $0x110] sm:$0xff]
    %v62 = vld [vmem:[%s0 + $0x118] sm:$0xff]
    %v63 = vld [vmem:[%s0 + $0x120] sm:$0xff]
    %v64 = vld [vmem:[%s0 + $0x128] sm:$0xff]
    %v65 = vld [vmem:[%s2] sm:$0x1]
    %v67 = vlaneseq
    %v68 = vshrl.u32 %v67, 7
    %v69 = vsub.s32 0, %v68
    %v70 = vrot.slane %v65, %v69
    %v72 = vld [vmem:[%s1] sm:$0x1]
    %74 = vset.pattern.permute.xlu0 0
    %75 = vperm.xlu0 %74, %v27
    %v76 = vpop.permute.xlu0 %75
    %79 = vset.pattern.permute.xlu0 0
    %80 = vperm.xlu0 %79, %v28
    %v81 = vpop.permute.xlu0 %80
    %84 = vset.pattern.permute.xlu0 0
    %85 = vperm.xlu0 %84, %v29
    %v86 = vpop.permute.xlu0 %85
    %89 = vset.pattern.permute.xlu0 0
    %90 = vperm.xlu0 %89, %v30
    %v91 = vpop.permute.xlu0 %90
    %94 = vset.pattern.permute.xlu0 0
    %95 = vperm.xlu0 %94, %v31
    %v96 = vpop.permute.xlu0 %95
    %99 = vset.pattern.permute.xlu0 0
    %100 = vperm.xlu0 %99, %v32
    %v101 = vpop.permute.xlu0 %100
    %104 = vset.pattern.permute.xlu0 0
    %105 = vperm.xlu0 %104, %v33
    %v106 = vpop.permute.xlu0 %105
    %109 = vset.pattern.permute.xlu0 0
    %110 = vperm.xlu0 %109, %v34
    %v111 = vpop.permute.xlu0 %110
    %114 = vset.pattern.permute.xlu0 0
    %115 = vperm.xlu0 %114, %v35
    %v116 = vpop.permute.xlu0 %115
    %119 = vset.pattern.permute.xlu0 0
    %120 = vperm.xlu0 %119, %v36
    %v121 = vpop.permute.xlu0 %120
    %124 = vset.pattern.permute.xlu0 0
    %125 = vperm.xlu0 %124, %v37
    %v126 = vpop.permute.xlu0 %125
    %129 = vset.pattern.permute.xlu0 0
    %130 = vperm.xlu0 %129, %v38
    %v131 = vpop.permute.xlu0 %130
    %134 = vset.pattern.permute.xlu0 0
    %135 = vperm.xlu0 %134, %v39
    %v136 = vpop.permute.xlu0 %135
    %139 = vset.pattern.permute.xlu0 0
    %140 = vperm.xlu0 %139, %v40
    %v141 = vpop.permute.xlu0 %140
    %144 = vset.pattern.permute.xlu0 0
    %145 = vperm.xlu0 %144, %v41
    %v146 = vpop.permute.xlu0 %145
    %149 = vset.pattern.permute.xlu0 0
    %150 = vperm.xlu0 %149, %v42
    %v151 = vpop.permute.xlu0 %150
    %154 = vset.pattern.permute.xlu0 0
    %155 = vperm.xlu0 %154, %v43
    %v156 = vpop.permute.xlu0 %155
    %159 = vset.pattern.permute.xlu0 0
    %160 = vperm.xlu0 %159, %v44
    %v161 = vpop.permute.xlu0 %160
    %164 = vset.pattern.permute.xlu0 0
    %165 = vperm.xlu0 %164, %v45
    %v166 = vpop.permute.xlu0 %165
    %169 = vset.pattern.permute.xlu0 0
    %170 = vperm.xlu0 %169, %v46
    %v171 = vpop.permute.xlu0 %170
    %174 = vset.pattern.permute.xlu0 0
    %175 = vperm.xlu0 %174, %v47
    %v176 = vpop.permute.xlu0 %175
    %179 = vset.pattern.permute.xlu0 0
    %180 = vperm.xlu0 %179, %v48
    %v181 = vpop.permute.xlu0 %180
    %184 = vset.pattern.permute.xlu0 0
    %185 = vperm.xlu0 %184, %v49
    %v186 = vpop.permute.xlu0 %185
    %189 = vset.pattern.permute.xlu0 0
    %190 = vperm.xlu0 %189, %v50
    %v191 = vpop.permute.xlu0 %190
    %194 = vset.pattern.permute.xlu0 0
    %195 = vperm.xlu0 %194, %v51
    %v196 = vpop.permute.xlu0 %195
    %199 = vset.pattern.permute.xlu0 0
    %200 = vperm.xlu0 %199, %v52
    %v201 = vpop.permute.xlu0 %200
    %204 = vset.pattern.permute.xlu0 0
    %205 = vperm.xlu0 %204, %v53
    %v206 = vpop.permute.xlu0 %205
    %209 = vset.pattern.permute.xlu0 0
    %210 = vperm.xlu0 %209, %v54
    %v211 = vpop.permute.xlu0 %210
    %214 = vset.pattern.permute.xlu0 0
    %215 = vperm.xlu0 %214, %v55
    %v216 = vpop.permute.xlu0 %215
    %219 = vset.pattern.permute.xlu0 0
    %220 = vperm.xlu0 %219, %v56
    %v221 = vpop.permute.xlu0 %220
    %224 = vset.pattern.permute.xlu0 0
    %225 = vperm.xlu0 %224, %v57
    %v226 = vpop.permute.xlu0 %225
    %229 = vset.pattern.permute.xlu0 0
    %230 = vperm.xlu0 %229, %v58
    %v231 = vpop.permute.xlu0 %230
    %234 = vset.pattern.permute.xlu0 0
    %235 = vperm.xlu0 %234, %v59
    %v236 = vpop.permute.xlu0 %235
    %239 = vset.pattern.permute.xlu0 0
    %240 = vperm.xlu0 %239, %v60
    %v241 = vpop.permute.xlu0 %240
    %244 = vset.pattern.permute.xlu0 0
    %245 = vperm.xlu0 %244, %v61
    %v246 = vpop.permute.xlu0 %245
    %249 = vset.pattern.permute.xlu0 0
    %250 = vperm.xlu0 %249, %v62
    %v251 = vpop.permute.xlu0 %250
    %254 = vset.pattern.permute.xlu0 0
    %255 = vperm.xlu0 %254, %v63
    %v256 = vpop.permute.xlu0 %255
    %259 = vset.pattern.permute.xlu0 0
    %260 = vperm.xlu0 %259, %v64
    %v261 = vpop.permute.xlu0 %260
    %v263 = vlaneseq
    %v264 = vshrl.u32 %v263, 7
    %v265 = vsub.s32 0, %v264
    %v266 = vrot.slane %v72, %v265
    %v267 = vmul.f32 %v76, %v266
    %v268 = vmul.f32 %v81, %v266
    %v269 = vmul.f32 %v86, %v266
    %v270 = vmul.f32 %v91, %v266
    %v271 = vmul.f32 %v96, %v266
    %v272 = vmul.f32 %v101, %v266
    %v273 = vmul.f32 %v106, %v266
    %v274 = vmul.f32 %v111, %v266
    %v275 = vmul.f32 %v116, %v266
    %v276 = vmul.f32 %v121, %v266
    %v277 = vmul.f32 %v126, %v266
    %v278 = vmul.f32 %v131, %v266
    %v279 = vmul.f32 %v136, %v266
    %v280 = vmul.f32 %v141, %v266
    %v281 = vmul.f32 %v146, %v266
    %v282 = vmul.f32 %v151, %v266
    %v283 = vmul.f32 %v156, %v266
    %v284 = vmul.f32 %v161, %v266
    %v285 = vmul.f32 %v166, %v266
    %v286 = vmul.f32 %v171, %v266
    %v287 = vmul.f32 %v176, %v266
    %v288 = vmul.f32 %v181, %v266
    %v289 = vmul.f32 %v186, %v266
    %v290 = vmul.f32 %v191, %v266
    %v291 = vmul.f32 %v196, %v266
    %v292 = vmul.f32 %v201, %v266
    %v293 = vmul.f32 %v206, %v266
    %v294 = vmul.f32 %v211, %v266
    %v295 = vmul.f32 %v216, %v266
    %v296 = vmul.f32 %v221, %v266
    %v297 = vmul.f32 %v226, %v266
    %v298 = vmul.f32 %v231, %v266
    %v299 = vmul.f32 %v236, %v266
    %v300 = vmul.f32 %v241, %v266
    %v301 = vmul.f32 %v246, %v266
    %v302 = vmul.f32 %v251, %v266
    %v303 = vmul.f32 %v256, %v266
    %v304 = vmul.f32 %v261, %v266
    %v305 = vadd.f32 %v70, %v267
    %v306 = vadd.f32 %v70, %v268
    %v307 = vadd.f32 %v70, %v269
    %v308 = vadd.f32 %v70, %v270
    %v309 = vadd.f32 %v70, %v271
    %v310 = vadd.f32 %v70, %v272
    %v311 = vadd.f32 %v70, %v273
    %v312 = vadd.f32 %v70, %v274
    %v313 = vadd.f32 %v70, %v275
    %v314 = vadd.f32 %v70, %v276
    %v315 = vadd.f32 %v70, %v277
    %v316 = vadd.f32 %v70, %v278
    %v317 = vadd.f32 %v70, %v279
    %v318 = vadd.f32 %v70, %v280
    %v319 = vadd.f32 %v70, %v281
    %v320 = vadd.f32 %v70, %v282
    %v321 = vadd.f32 %v70, %v283
    %v322 = vadd.f32 %v70, %v284
    %v323 = vadd.f32 %v70, %v285
    %v324 = vadd.f32 %v70, %v286
    %v325 = vadd.f32 %v70, %v287
    %v326 = vadd.f32 %v70, %v288
    %v327 = vadd.f32 %v70, %v289
    %v328 = vadd.f32 %v70, %v290
    %v329 = vadd.f32 %v70, %v291
    %v330 = vadd.f32 %v70, %v292
    %v331 = vadd.f32 %v70, %v293
    %v332 = vadd.f32 %v70, %v294
    %v333 = vadd.f32 %v70, %v295
    %v334 = vadd.f32 %v70, %v296
    %v335 = vadd.f32 %v70, %v297
    %v336 = vadd.f32 %v70, %v298
    %v337 = vadd.f32 %v70, %v299
    %v338 = vadd.f32 %v70, %v300
    %v339 = vadd.f32 %v70, %v301
    %v340 = vadd.f32 %v70, %v302
    %v341 = vadd.f32 %v70, %v303
    %v342 = vadd.f32 %v70, %v304
    %v343 = vld [vmem:[%s1 + $0x1] sm:$0x1]
    %344 = vset.pattern.permute.xlu0 1
    %345 = vperm.xlu0 %344, %v27
    %v346 = vpop.permute.xlu0 %345
    %348 = vset.pattern.permute.xlu0 1
    %349 = vperm.xlu0 %348, %v28
    %v350 = vpop.permute.xlu0 %349
    %352 = vset.pattern.permute.xlu0 1
    %353 = vperm.xlu0 %352, %v29
    %v354 = vpop.permute.xlu0 %353
    %356 = vset.pattern.permute.xlu0 1
    %357 = vperm.xlu0 %356, %v30
    %v358 = vpop.permute.xlu0 %357
    %360 = vset.pattern.permute.xlu0 1
    %361 = vperm.xlu0 %360, %v31
    %v362 = vpop.permute.xlu0 %361
    %364 = vset.pattern.permute.xlu0 1
    %365 = vperm.xlu0 %364, %v32
    %v366 = vpop.permute.xlu0 %365
    %368 = vset.pattern.permute.xlu0 1
    %369 = vperm.xlu0 %368, %v33
    %v370 = vpop.permute.xlu0 %369
    %372 = vset.pattern.permute.xlu0 1
    %373 = vperm.xlu0 %372, %v34
    %v374 = vpop.permute.xlu0 %373
    %376 = vset.pattern.permute.xlu0 1
    %377 = vperm.xlu0 %376, %v35
    %v378 = vpop.permute.xlu0 %377
    %380 = vset.pattern.permute.xlu0 1
    %381 = vperm.xlu0 %380, %v36
    %v382 = vpop.permute.xlu0 %381
    %384 = vset.pattern.permute.xlu0 1
    %385 = vperm.xlu0 %384, %v37
    %v386 = vpop.permute.xlu0 %385
    %388 = vset.pattern.permute.xlu0 1
    %389 = vperm.xlu0 %388, %v38
    %v390 = vpop.permute.xlu0 %389
    %392 = vset.pattern.permute.xlu0 1
    %393 = vperm.xlu0 %392, %v39
    %v394 = vpop.permute.xlu0 %393
    %396 = vset.pattern.permute.xlu0 1
    %397 = vperm.xlu0 %396, %v40
    %v398 = vpop.permute.xlu0 %397
    %400 = vset.pattern.permute.xlu0 1
    %401 = vperm.xlu0 %400, %v41
    %v402 = vpop.permute.xlu0 %401
    %404 = vset.pattern.permute.xlu0 1
    %405 = vperm.xlu0 %404, %v42
    %v406 = vpop.permute.xlu0 %405
    %408 = vset.pattern.permute.xlu0 1
    %409 = vperm.xlu0 %408, %v43
    %v410 = vpop.permute.xlu0 %409
    %412 = vset.pattern.permute.xlu0 1
    %413 = vperm.xlu0 %412, %v44
    %v414 = vpop.permute.xlu0 %413
    %416 = vset.pattern.permute.xlu0 1
    %417 = vperm.xlu0 %416, %v45
    %v418 = vpop.permute.xlu0 %417
    %420 = vset.pattern.permute.xlu0 1
    %421 = vperm.xlu0 %420, %v46
    %v422 = vpop.permute.xlu0 %421
    %424 = vset.pattern.permute.xlu0 1
    %425 = vperm.xlu0 %424, %v47
    %v426 = vpop.permute.xlu0 %425
    %428 = vset.pattern.permute.xlu0 1
    %429 = vperm.xlu0 %428, %v48
    %v430 = vpop.permute.xlu0 %429
    %432 = vset.pattern.permute.xlu0 1
    %433 = vperm.xlu0 %432, %v49
    %v434 = vpop.permute.xlu0 %433
    %436 = vset.pattern.permute.xlu0 1
    %437 = vperm.xlu0 %436, %v50
    %v438 = vpop.permute.xlu0 %437
    %440 = vset.pattern.permute.xlu0 1
    %441 = vperm.xlu0 %440, %v51
    %v442 = vpop.permute.xlu0 %441
    %444 = vset.pattern.permute.xlu0 1
    %445 = vperm.xlu0 %444, %v52
    %v446 = vpop.permute.xlu0 %445
    %448 = vset.pattern.permute.xlu0 1
    %449 = vperm.xlu0 %448, %v53
    %v450 = vpop.permute.xlu0 %449
    %452 = vset.pattern.permute.xlu0 1
    %453 = vperm.xlu0 %452, %v54
    %v454 = vpop.permute.xlu0 %453
    %456 = vset.pattern.permute.xlu0 1
    %457 = vperm.xlu0 %456, %v55
    %v458 = vpop.permute.xlu0 %457
    %460 = vset.pattern.permute.xlu0 1
    %461 = vperm.xlu0 %460, %v56
    %v462 = vpop.permute.xlu0 %461
    %464 = vset.pattern.permute.xlu0 1
    %465 = vperm.xlu0 %464, %v57
    %v466 = vpop.permute.xlu0 %465
    %468 = vset.pattern.permute.xlu0 1
    %469 = vperm.xlu0 %468, %v58
    %v470 = vpop.permute.xlu0 %469
    %472 = vset.pattern.permute.xlu0 1
    %473 = vperm.xlu0 %472, %v59
    %v474 = vpop.permute.xlu0 %473
    %476 = vset.pattern.permute.xlu0 1
    %477 = vperm.xlu0 %476, %v60
    %v478 = vpop.permute.xlu0 %477
    %480 = vset.pattern.permute.xlu0 1
    %481 = vperm.xlu0 %480, %v61
    %v482 = vpop.permute.xlu0 %481
    %484 = vset.pattern.permute.xlu0 1
    %485 = vperm.xlu0 %484, %v62
    %v486 = vpop.permute.xlu0 %485
    %488 = vset.pattern.permute.xlu0 1
    %489 = vperm.xlu0 %488, %v63
    %v490 = vpop.permute.xlu0 %489
    %492 = vset.pattern.permute.xlu0 1
    %493 = vperm.xlu0 %492, %v64
    %v494 = vpop.permute.xlu0 %493
    %v496 = vlaneseq
    %v497 = vshrl.u32 %v496, 7
    %v498 = vsub.s32 0, %v497
    %v499 = vrot.slane %v343, %v498
    %v500 = vmul.f32 %v346, %v499
    %v501 = vmul.f32 %v350, %v499
    %v502 = vmul.f32 %v354, %v499
    %v503 = vmul.f32 %v358, %v499
    %v504 = vmul.f32 %v362, %v499
    %v505 = vmul.f32 %v366, %v499
    %v506 = vmul.f32 %v370, %v499
    %v507 = vmul.f32 %v374, %v499
    %v508 = vmul.f32 %v378, %v499
    %v509 = vmul.f32 %v382, %v499
    %v510 = vmul.f32 %v386, %v499
    %v511 = vmul.f32 %v390, %v499
    %v512 = vmul.f32 %v394, %v499
    %v513 = vmul.f32 %v398, %v499
    %v514 = vmul.f32 %v402, %v499
    %v515 = vmul.f32 %v406, %v499
    %v516 = vmul.f32 %v410, %v499
    %v517 = vmul.f32 %v414, %v499
    %v518 = vmul.f32 %v418, %v499
    %v519 = vmul.f32 %v422, %v499
    %v520 = vmul.f32 %v426, %v499
    %v521 = vmul.f32 %v430, %v499
    %v522 = vmul.f32 %v434, %v499
    %v523 = vmul.f32 %v438, %v499
    %v524 = vmul.f32 %v442, %v499
    %v525 = vmul.f32 %v446, %v499
    %v526 = vmul.f32 %v450, %v499
    %v527 = vmul.f32 %v454, %v499
    %v528 = vmul.f32 %v458, %v499
    %v529 = vmul.f32 %v462, %v499
    %v530 = vmul.f32 %v466, %v499
    %v531 = vmul.f32 %v470, %v499
    %v532 = vmul.f32 %v474, %v499
    %v533 = vmul.f32 %v478, %v499
    %v534 = vmul.f32 %v482, %v499
    %v535 = vmul.f32 %v486, %v499
    %v536 = vmul.f32 %v490, %v499
    %v537 = vmul.f32 %v494, %v499
    %v538 = vadd.f32 %v305, %v500
    %v539 = vadd.f32 %v306, %v501
    %v540 = vadd.f32 %v307, %v502
    %v541 = vadd.f32 %v308, %v503
    %v542 = vadd.f32 %v309, %v504
    %v543 = vadd.f32 %v310, %v505
    %v544 = vadd.f32 %v311, %v506
    %v545 = vadd.f32 %v312, %v507
    %v546 = vadd.f32 %v313, %v508
    %v547 = vadd.f32 %v314, %v509
    %v548 = vadd.f32 %v315, %v510
    %v549 = vadd.f32 %v316, %v511
    %v550 = vadd.f32 %v317, %v512
    %v551 = vadd.f32 %v318, %v513
    %v552 = vadd.f32 %v319, %v514
    %v553 = vadd.f32 %v320, %v515
    %v554 = vadd.f32 %v321, %v516
    %v555 = vadd.f32 %v322, %v517
    %v556 = vadd.f32 %v323, %v518
    %v557 = vadd.f32 %v324, %v519
    %v558 = vadd.f32 %v325, %v520
    %v559 = vadd.f32 %v326, %v521
    %v560 = vadd.f32 %v327, %v522
    %v561 = vadd.f32 %v328, %v523
    %v562 = vadd.f32 %v329, %v524
    %v563 = vadd.f32 %v330, %v525
    %v564 = vadd.f32 %v331, %v526
    %v565 = vadd.f32 %v332, %v527
    %v566 = vadd.f32 %v333, %v528
    %v567 = vadd.f32 %v334, %v529
    %v568 = vadd.f32 %v335, %v530
    %v569 = vadd.f32 %v336, %v531
    %v570 = vadd.f32 %v337, %v532
    %v571 = vadd.f32 %v338, %v533
    %v572 = vadd.f32 %v339, %v534
    %v573 = vadd.f32 %v340, %v535
    %v574 = vadd.f32 %v341, %v536
    %v575 = vadd.f32 %v342, %v537
    %v576 = vld [vmem:[%s1 + $0x2] sm:$0x1]
    %577 = vset.pattern.permute.xlu0 2
    %578 = vperm.xlu0 %577, %v27
    %v579 = vpop.permute.xlu0 %578
    %581 = vset.pattern.permute.xlu0 2
    %582 = vperm.xlu0 %581, %v28
    %v583 = vpop.permute.xlu0 %582
    %585 = vset.pattern.permute.xlu0 2
    %586 = vperm.xlu0 %585, %v29
    %v587 = vpop.permute.xlu0 %586
    %589 = vset.pattern.permute.xlu0 2
    %590 = vperm.xlu0 %589, %v30
    %v591 = vpop.permute.xlu0 %590
    %593 = vset.pattern.permute.xlu0 2
    %594 = vperm.xlu0 %593, %v31
    %v595 = vpop.permute.xlu0 %594
    %597 = vset.pattern.permute.xlu0 2
    %598 = vperm.xlu0 %597, %v32
    %v599 = vpop.permute.xlu0 %598
    %601 = vset.pattern.permute.xlu0 2
    %602 = vperm.xlu0 %601, %v33
    %v603 = vpop.permute.xlu0 %602
    %605 = vset.pattern.permute.xlu0 2
    %606 = vperm.xlu0 %605, %v34
    %v607 = vpop.permute.xlu0 %606
    %609 = vset.pattern.permute.xlu0 2
    %610 = vperm.xlu0 %609, %v35
    %v611 = vpop.permute.xlu0 %610
    %613 = vset.pattern.permute.xlu0 2
    %614 = vperm.xlu0 %613, %v36
    %v615 = vpop.permute.xlu0 %614
    %617 = vset.pattern.permute.xlu0 2
    %618 = vperm.xlu0 %617, %v37
    %v619 = vpop.permute.xlu0 %618
    %621 = vset.pattern.permute.xlu0 2
    %622 = vperm.xlu0 %621, %v38
    %v623 = vpop.permute.xlu0 %622
    %625 = vset.pattern.permute.xlu0 2
    %626 = vperm.xlu0 %625, %v39
    %v627 = vpop.permute.xlu0 %626
    %629 = vset.pattern.permute.xlu0 2
    %630 = vperm.xlu0 %629, %v40
    %v631 = vpop.permute.xlu0 %630
    %633 = vset.pattern.permute.xlu0 2
    %634 = vperm.xlu0 %633, %v41
    %v635 = vpop.permute.xlu0 %634
    %637 = vset.pattern.permute.xlu0 2
    %638 = vperm.xlu0 %637, %v42
    %v639 = vpop.permute.xlu0 %638
    %641 = vset.pattern.permute.xlu0 2
    %642 = vperm.xlu0 %641, %v43
    %v643 = vpop.permute.xlu0 %642
    %645 = vset.pattern.permute.xlu0 2
    %646 = vperm.xlu0 %645, %v44
    %v647 = vpop.permute.xlu0 %646
    %649 = vset.pattern.permute.xlu0 2
    %650 = vperm.xlu0 %649, %v45
    %v651 = vpop.permute.xlu0 %650
    %653 = vset.pattern.permute.xlu0 2
    %654 = vperm.xlu0 %653, %v46
    %v655 = vpop.permute.xlu0 %654
    %657 = vset.pattern.permute.xlu0 2
    %658 = vperm.xlu0 %657, %v47
    %v659 = vpop.permute.xlu0 %658
    %661 = vset.pattern.permute.xlu0 2
    %662 = vperm.xlu0 %661, %v48
    %v663 = vpop.permute.xlu0 %662
    %665 = vset.pattern.permute.xlu0 2
    %666 = vperm.xlu0 %665, %v49
    %v667 = vpop.permute.xlu0 %666
    %669 = vset.pattern.permute.xlu0 2
    %670 = vperm.xlu0 %669, %v50
    %v671 = vpop.permute.xlu0 %670
    %673 = vset.pattern.permute.xlu0 2
    %674 = vperm.xlu0 %673, %v51
    %v675 = vpop.permute.xlu0 %674
    %677 = vset.pattern.permute.xlu0 2
    %678 = vperm.xlu0 %677, %v52
    %v679 = vpop.permute.xlu0 %678
    %681 = vset.pattern.permute.xlu0 2
    %682 = vperm.xlu0 %681, %v53
    %v683 = vpop.permute.xlu0 %682
    %685 = vset.pattern.permute.xlu0 2
    %686 = vperm.xlu0 %685, %v54
    %v687 = vpop.permute.xlu0 %686
    %689 = vset.pattern.permute.xlu0 2
    %690 = vperm.xlu0 %689, %v55
    %v691 = vpop.permute.xlu0 %690
    %693 = vset.pattern.permute.xlu0 2
    %694 = vperm.xlu0 %693, %v56
    %v695 = vpop.permute.xlu0 %694
    %697 = vset.pattern.permute.xlu0 2
    %698 = vperm.xlu0 %697, %v57
    %v699 = vpop.permute.xlu0 %698
    %701 = vset.pattern.permute.xlu0 2
    %702 = vperm.xlu0 %701, %v58
    %v703 = vpop.permute.xlu0 %702
    %705 = vset.pattern.permute.xlu0 2
    %706 = vperm.xlu0 %705, %v59
    %v707 = vpop.permute.xlu0 %706
    %709 = vset.pattern.permute.xlu0 2
    %710 = vperm.xlu0 %709, %v60
    %v711 = vpop.permute.xlu0 %710
    %713 = vset.pattern.permute.xlu0 2
    %714 = vperm.xlu0 %713, %v61
    %v715 = vpop.permute.xlu0 %714
    %717 = vset.pattern.permute.xlu0 2
    %718 = vperm.xlu0 %717, %v62
    %v719 = vpop.permute.xlu0 %718
    %721 = vset.pattern.permute.xlu0 2
    %722 = vperm.xlu0 %721, %v63
    %v723 = vpop.permute.xlu0 %722
    %725 = vset.pattern.permute.xlu0 2
    %726 = vperm.xlu0 %725, %v64
    %v727 = vpop.permute.xlu0 %726
    %v729 = vlaneseq
    %v730 = vshrl.u32 %v729, 7
    %v731 = vsub.s32 0, %v730
    %v732 = vrot.slane %v576, %v731
    %v733 = vmul.f32 %v579, %v732
    %v734 = vmul.f32 %v583, %v732
    %v735 = vmul.f32 %v587, %v732
    %v736 = vmul.f32 %v591, %v732
    %v737 = vmul.f32 %v595, %v732
    %v738 = vmul.f32 %v599, %v732
    %v739 = vmul.f32 %v603, %v732
    %v740 = vmul.f32 %v607, %v732
    %v741 = vmul.f32 %v611, %v732
    %v742 = vmul.f32 %v615, %v732
    %v743 = vmul.f32 %v619, %v732
    %v744 = vmul.f32 %v623, %v732
    %v745 = vmul.f32 %v627, %v732
    %v746 = vmul.f32 %v631, %v732
    %v747 = vmul.f32 %v635, %v732
    %v748 = vmul.f32 %v639, %v732
    %v749 = vmul.f32 %v643, %v732
    %v750 = vmul.f32 %v647, %v732
    %v751 = vmul.f32 %v651, %v732
    %v752 = vmul.f32 %v655, %v732
    %v753 = vmul.f32 %v659, %v732
    %v754 = vmul.f32 %v663, %v732
    %v755 = vmul.f32 %v667, %v732
    %v756 = vmul.f32 %v671, %v732
    %v757 = vmul.f32 %v675, %v732
    %v758 = vmul.f32 %v679, %v732
    %v759 = vmul.f32 %v683, %v732
    %v760 = vmul.f32 %v687, %v732
    %v761 = vmul.f32 %v691, %v732
    %v762 = vmul.f32 %v695, %v732
    %v763 = vmul.f32 %v699, %v732
    %v764 = vmul.f32 %v703, %v732
    %v765 = vmul.f32 %v707, %v732
    %v766 = vmul.f32 %v711, %v732
    %v767 = vmul.f32 %v715, %v732
    %v768 = vmul.f32 %v719, %v732
    %v769 = vmul.f32 %v723, %v732
    %v770 = vmul.f32 %v727, %v732
    %v771 = vadd.f32 %v538, %v733
    %v772 = vadd.f32 %v539, %v734
    %v773 = vadd.f32 %v540, %v735
    %v774 = vadd.f32 %v541, %v736
    %v775 = vadd.f32 %v542, %v737
    %v776 = vadd.f32 %v543, %v738
    %v777 = vadd.f32 %v544, %v739
    %v778 = vadd.f32 %v545, %v740
    %v779 = vadd.f32 %v546, %v741
    %v780 = vadd.f32 %v547, %v742
    %v781 = vadd.f32 %v548, %v743
    %v782 = vadd.f32 %v549, %v744
    %v783 = vadd.f32 %v550, %v745
    %v784 = vadd.f32 %v551, %v746
    %v785 = vadd.f32 %v552, %v747
    %v786 = vadd.f32 %v553, %v748
    %v787 = vadd.f32 %v554, %v749
    %v788 = vadd.f32 %v555, %v750
    %v789 = vadd.f32 %v556, %v751
    %v790 = vadd.f32 %v557, %v752
    %v791 = vadd.f32 %v558, %v753
    %v792 = vadd.f32 %v559, %v754
    %v793 = vadd.f32 %v560, %v755
    %v794 = vadd.f32 %v561, %v756
    %v795 = vadd.f32 %v562, %v757
    %v796 = vadd.f32 %v563, %v758
    %v797 = vadd.f32 %v564, %v759
    %v798 = vadd.f32 %v565, %v760
    %v799 = vadd.f32 %v566, %v761
    %v800 = vadd.f32 %v567, %v762
    %v801 = vadd.f32 %v568, %v763
    %v802 = vadd.f32 %v569, %v764
    %v803 = vadd.f32 %v570, %v765
    %v804 = vadd.f32 %v571, %v766
    %v805 = vadd.f32 %v572, %v767
    %v806 = vadd.f32 %v573, %v768
    %v807 = vadd.f32 %v574, %v769
    %v808 = vadd.f32 %v575, %v770
    %v809 = vld [vmem:[%s1 + $0x3] sm:$0x1]
    %810 = vset.pattern.permute.xlu0 3
    %811 = vperm.xlu0 %810, %v27
    %v812 = vpop.permute.xlu0 %811
    %814 = vset.pattern.permute.xlu0 3
    %815 = vperm.xlu0 %814, %v28
    %v816 = vpop.permute.xlu0 %815
    %818 = vset.pattern.permute.xlu0 3
    %819 = vperm.xlu0 %818, %v29
    %v820 = vpop.permute.xlu0 %819
    %822 = vset.pattern.permute.xlu0 3
    %823 = vperm.xlu0 %822, %v30
    %v824 = vpop.permute.xlu0 %823
    %826 = vset.pattern.permute.xlu0 3
    %827 = vperm.xlu0 %826, %v31
    %v828 = vpop.permute.xlu0 %827
    %830 = vset.pattern.permute.xlu0 3
    %831 = vperm.xlu0 %830, %v32
    %v832 = vpop.permute.xlu0 %831
    %834 = vset.pattern.permute.xlu0 3
    %835 = vperm.xlu0 %834, %v33
    %v836 = vpop.permute.xlu0 %835
    %838 = vset.pattern.permute.xlu0 3
    %839 = vperm.xlu0 %838, %v34
    %v840 = vpop.permute.xlu0 %839
    %842 = vset.pattern.permute.xlu0 3
    %843 = vperm.xlu0 %842, %v35
    %v844 = vpop.permute.xlu0 %843
    %846 = vset.pattern.permute.xlu0 3
    %847 = vperm.xlu0 %846, %v36
    %v848 = vpop.permute.xlu0 %847
    %850 = vset.pattern.permute.xlu0 3
    %851 = vperm.xlu0 %850, %v37
    %v852 = vpop.permute.xlu0 %851
    %854 = vset.pattern.permute.xlu0 3
    %855 = vperm.xlu0 %854, %v38
    %v856 = vpop.permute.xlu0 %855
    %858 = vset.pattern.permute.xlu0 3
    %859 = vperm.xlu0 %858, %v39
    %v860 = vpop.permute.xlu0 %859
    %862 = vset.pattern.permute.xlu0 3
    %863 = vperm.xlu0 %862, %v40
    %v864 = vpop.permute.xlu0 %863
    %866 = vset.pattern.permute.xlu0 3
    %867 = vperm.xlu0 %866, %v41
    %v868 = vpop.permute.xlu0 %867
    %870 = vset.pattern.permute.xlu0 3
    %871 = vperm.xlu0 %870, %v42
    %v872 = vpop.permute.xlu0 %871
    %874 = vset.pattern.permute.xlu0 3
    %875 = vperm.xlu0 %874, %v43
    %v876 = vpop.permute.xlu0 %875
    %878 = vset.pattern.permute.xlu0 3
    %879 = vperm.xlu0 %878, %v44
    %v880 = vpop.permute.xlu0 %879
    %882 = vset.pattern.permute.xlu0 3
    %883 = vperm.xlu0 %882, %v45
    %v884 = vpop.permute.xlu0 %883
    %886 = vset.pattern.permute.xlu0 3
    %887 = vperm.xlu0 %886, %v46
    %v888 = vpop.permute.xlu0 %887
    %890 = vset.pattern.permute.xlu0 3
    %891 = vperm.xlu0 %890, %v47
    %v892 = vpop.permute.xlu0 %891
    %894 = vset.pattern.permute.xlu0 3
    %895 = vperm.xlu0 %894, %v48
    %v896 = vpop.permute.xlu0 %895
    %898 = vset.pattern.permute.xlu0 3
    %899 = vperm.xlu0 %898, %v49
    %v900 = vpop.permute.xlu0 %899
    %902 = vset.pattern.permute.xlu0 3
    %903 = vperm.xlu0 %902, %v50
    %v904 = vpop.permute.xlu0 %903
    %906 = vset.pattern.permute.xlu0 3
    %907 = vperm.xlu0 %906, %v51
    %v908 = vpop.permute.xlu0 %907
    %910 = vset.pattern.permute.xlu0 3
    %911 = vperm.xlu0 %910, %v52
    %v912 = vpop.permute.xlu0 %911
    %914 = vset.pattern.permute.xlu0 3
    %915 = vperm.xlu0 %914, %v53
    %v916 = vpop.permute.xlu0 %915
    %918 = vset.pattern.permute.xlu0 3
    %919 = vperm.xlu0 %918, %v54
    %v920 = vpop.permute.xlu0 %919
    %922 = vset.pattern.permute.xlu0 3
    %923 = vperm.xlu0 %922, %v55
    %v924 = vpop.permute.xlu0 %923
    %926 = vset.pattern.permute.xlu0 3
    %927 = vperm.xlu0 %926, %v56
    %v928 = vpop.permute.xlu0 %927
    %930 = vset.pattern.permute.xlu0 3
    %931 = vperm.xlu0 %930, %v57
    %v932 = vpop.permute.xlu0 %931
    %934 = vset.pattern.permute.xlu0 3
    %935 = vperm.xlu0 %934, %v58
    %v936 = vpop.permute.xlu0 %935
    %938 = vset.pattern.permute.xlu0 3
    %939 = vperm.xlu0 %938, %v59
    %v940 = vpop.permute.xlu0 %939
    %942 = vset.pattern.permute.xlu0 3
    %943 = vperm.xlu0 %942, %v60
    %v944 = vpop.permute.xlu0 %943
    %946 = vset.pattern.permute.xlu0 3
    %947 = vperm.xlu0 %946, %v61
    %v948 = vpop.permute.xlu0 %947
    %950 = vset.pattern.permute.xlu0 3
    %951 = vperm.xlu0 %950, %v62
    %v952 = vpop.permute.xlu0 %951
    %954 = vset.pattern.permute.xlu0 3
    %955 = vperm.xlu0 %954, %v63
    %v956 = vpop.permute.xlu0 %955
    %958 = vset.pattern.permute.xlu0 3
    %959 = vperm.xlu0 %958, %v64
    %v960 = vpop.permute.xlu0 %959
    %v962 = vlaneseq
    %v963 = vshrl.u32 %v962, 7
    %v964 = vsub.s32 0, %v963
    %v965 = vrot.slane %v809, %v964
    %v966 = vmul.f32 %v812, %v965
    %v967 = vmul.f32 %v816, %v965
    %v968 = vmul.f32 %v820, %v965
    %v969 = vmul.f32 %v824, %v965
    %v970 = vmul.f32 %v828, %v965
    %v971 = vmul.f32 %v832, %v965
    %v972 = vmul.f32 %v836, %v965
    %v973 = vmul.f32 %v840, %v965
    %v974 = vmul.f32 %v844, %v965
    %v975 = vmul.f32 %v848, %v965
    %v976 = vmul.f32 %v852, %v965
    %v977 = vmul.f32 %v856, %v965
    %v978 = vmul.f32 %v860, %v965
    %v979 = vmul.f32 %v864, %v965
    %v980 = vmul.f32 %v868, %v965
    %v981 = vmul.f32 %v872, %v965
    %v982 = vmul.f32 %v876, %v965
    %v983 = vmul.f32 %v880, %v965
    %v984 = vmul.f32 %v884, %v965
    %v985 = vmul.f32 %v888, %v965
    %v986 = vmul.f32 %v892, %v965
    %v987 = vmul.f32 %v896, %v965
    %v988 = vmul.f32 %v900, %v965
    %v989 = vmul.f32 %v904, %v965
    %v990 = vmul.f32 %v908, %v965
    %v991 = vmul.f32 %v912, %v965
    %v992 = vmul.f32 %v916, %v965
    %v993 = vmul.f32 %v920, %v965
    %v994 = vmul.f32 %v924, %v965
    %v995 = vmul.f32 %v928, %v965
    %v996 = vmul.f32 %v932, %v965
    %v997 = vmul.f32 %v936, %v965
    %v998 = vmul.f32 %v940, %v965
    %v999 = vmul.f32 %v944, %v965
    %v1000 = vmul.f32 %v948, %v965
    %v1001 = vmul.f32 %v952, %v965
    %v1002 = vmul.f32 %v956, %v965
    %v1003 = vmul.f32 %v960, %v965
    %v1004 = vadd.f32 %v771, %v966
    %v1005 = vadd.f32 %v772, %v967
    %v1006 = vadd.f32 %v773, %v968
    %v1007 = vadd.f32 %v774, %v969
    %v1008 = vadd.f32 %v775, %v970
    %v1009 = vadd.f32 %v776, %v971
    %v1010 = vadd.f32 %v777, %v972
    %v1011 = vadd.f32 %v778, %v973
    %v1012 = vadd.f32 %v779, %v974
    %v1013 = vadd.f32 %v780, %v975
    %v1014 = vadd.f32 %v781, %v976
    %v1015 = vadd.f32 %v782, %v977
    %v1016 = vadd.f32 %v783, %v978
    %v1017 = vadd.f32 %v784, %v979
    %v1018 = vadd.f32 %v785, %v980
    %v1019 = vadd.f32 %v786, %v981
    %v1020 = vadd.f32 %v787, %v982
    %v1021 = vadd.f32 %v788, %v983
    %v1022 = vadd.f32 %v789, %v984
    %v1023 = vadd.f32 %v790, %v985
    %v1024 = vadd.f32 %v791, %v986
    %v1025 = vadd.f32 %v792, %v987
    %v1026 = vadd.f32 %v793, %v988
    %v1027 = vadd.f32 %v794, %v989
    %v1028 = vadd.f32 %v795, %v990
    %v1029 = vadd.f32 %v796, %v991
    %v1030 = vadd.f32 %v797, %v992
    %v1031 = vadd.f32 %v798, %v993
    %v1032 = vadd.f32 %v799, %v994
    %v1033 = vadd.f32 %v800, %v995
    %v1034 = vadd.f32 %v801, %v996
    %v1035 = vadd.f32 %v802, %v997
    %v1036 = vadd.f32 %v803, %v998
    %v1037 = vadd.f32 %v804, %v999
    %v1038 = vadd.f32 %v805, %v1000
    %v1039 = vadd.f32 %v806, %v1001
    %v1040 = vadd.f32 %v807, %v1002
    %v1041 = vadd.f32 %v808, %v1003
    %v1042 = vld [vmem:[%s1 + $0x4] sm:$0x1]
    %1043 = vset.pattern.permute.xlu0 4
    %1044 = vperm.xlu0 %1043, %v27
    %v1045 = vpop.permute.xlu0 %1044
    %1047 = vset.pattern.permute.xlu0 4
    %1048 = vperm.xlu0 %1047, %v28
    %v1049 = vpop.permute.xlu0 %1048
    %1051 = vset.pattern.permute.xlu0 4
    %1052 = vperm.xlu0 %1051, %v29
    %v1053 = vpop.permute.xlu0 %1052
    %1055 = vset.pattern.permute.xlu0 4
    %1056 = vperm.xlu0 %1055, %v30
    %v1057 = vpop.permute.xlu0 %1056
    %1059 = vset.pattern.permute.xlu0 4
    %1060 = vperm.xlu0 %1059, %v31
    %v1061 = vpop.permute.xlu0 %1060
    %1063 = vset.pattern.permute.xlu0 4
    %1064 = vperm.xlu0 %1063, %v32
    %v1065 = vpop.permute.xlu0 %1064
    %1067 = vset.pattern.permute.xlu0 4
    %1068 = vperm.xlu0 %1067, %v33
    %v1069 = vpop.permute.xlu0 %1068
    %1071 = vset.pattern.permute.xlu0 4
    %1072 = vperm.xlu0 %1071, %v34
    %v1073 = vpop.permute.xlu0 %1072
    %1075 = vset.pattern.permute.xlu0 4
    %1076 = vperm.xlu0 %1075, %v35
    %v1077 = vpop.permute.xlu0 %1076
    %1079 = vset.pattern.permute.xlu0 4
    %1080 = vperm.xlu0 %1079, %v36
    %v1081 = vpop.permute.xlu0 %1080
    %1083 = vset.pattern.permute.xlu0 4
    %1084 = vperm.xlu0 %1083, %v37
    %v1085 = vpop.permute.xlu0 %1084
    %1087 = vset.pattern.permute.xlu0 4
    %1088 = vperm.xlu0 %1087, %v38
    %v1089 = vpop.permute.xlu0 %1088
    %1091 = vset.pattern.permute.xlu0 4
    %1092 = vperm.xlu0 %1091, %v39
    %v1093 = vpop.permute.xlu0 %1092
    %1095 = vset.pattern.permute.xlu0 4
    %1096 = vperm.xlu0 %1095, %v40
    %v1097 = vpop.permute.xlu0 %1096
    %1099 = vset.pattern.permute.xlu0 4
    %1100 = vperm.xlu0 %1099, %v41
    %v1101 = vpop.permute.xlu0 %1100
    %1103 = vset.pattern.permute.xlu0 4
    %1104 = vperm.xlu0 %1103, %v42
    %v1105 = vpop.permute.xlu0 %1104
    %1107 = vset.pattern.permute.xlu0 4
    %1108 = vperm.xlu0 %1107, %v43
    %v1109 = vpop.permute.xlu0 %1108
    %1111 = vset.pattern.permute.xlu0 4
    %1112 = vperm.xlu0 %1111, %v44
    %v1113 = vpop.permute.xlu0 %1112
    %1115 = vset.pattern.permute.xlu0 4
    %1116 = vperm.xlu0 %1115, %v45
    %v1117 = vpop.permute.xlu0 %1116
    %1119 = vset.pattern.permute.xlu0 4
    %1120 = vperm.xlu0 %1119, %v46
    %v1121 = vpop.permute.xlu0 %1120
    %1123 = vset.pattern.permute.xlu0 4
    %1124 = vperm.xlu0 %1123, %v47
    %v1125 = vpop.permute.xlu0 %1124
    %1127 = vset.pattern.permute.xlu0 4
    %1128 = vperm.xlu0 %1127, %v48
    %v1129 = vpop.permute.xlu0 %1128
    %1131 = vset.pattern.permute.xlu0 4
    %1132 = vperm.xlu0 %1131, %v49
    %v1133 = vpop.permute.xlu0 %1132
    %1135 = vset.pattern.permute.xlu0 4
    %1136 = vperm.xlu0 %1135, %v50
    %v1137 = vpop.permute.xlu0 %1136
    %1139 = vset.pattern.permute.xlu0 4
    %1140 = vperm.xlu0 %1139, %v51
    %v1141 = vpop.permute.xlu0 %1140
    %1143 = vset.pattern.permute.xlu0 4
    %1144 = vperm.xlu0 %1143, %v52
    %v1145 = vpop.permute.xlu0 %1144
    %1147 = vset.pattern.permute.xlu0 4
    %1148 = vperm.xlu0 %1147, %v53
    %v1149 = vpop.permute.xlu0 %1148
    %1151 = vset.pattern.permute.xlu0 4
    %1152 = vperm.xlu0 %1151, %v54
    %v1153 = vpop.permute.xlu0 %1152
    %1155 = vset.pattern.permute.xlu0 4
    %1156 = vperm.xlu0 %1155, %v55
    %v1157 = vpop.permute.xlu0 %1156
    %1159 = vset.pattern.permute.xlu0 4
    %1160 = vperm.xlu0 %1159, %v56
    %v1161 = vpop.permute.xlu0 %1160
    %1163 = vset.pattern.permute.xlu0 4
    %1164 = vperm.xlu0 %1163, %v57
    %v1165 = vpop.permute.xlu0 %1164
    %1167 = vset.pattern.permute.xlu0 4
    %1168 = vperm.xlu0 %1167, %v58
    %v1169 = vpop.permute.xlu0 %1168
    %1171 = vset.pattern.permute.xlu0 4
    %1172 = vperm.xlu0 %1171, %v59
    %v1173 = vpop.permute.xlu0 %1172
    %1175 = vset.pattern.permute.xlu0 4
    %1176 = vperm.xlu0 %1175, %v60
    %v1177 = vpop.permute.xlu0 %1176
    %1179 = vset.pattern.permute.xlu0 4
    %1180 = vperm.xlu0 %1179, %v61
    %v1181 = vpop.permute.xlu0 %1180
    %1183 = vset.pattern.permute.xlu0 4
    %1184 = vperm.xlu0 %1183, %v62
    %v1185 = vpop.permute.xlu0 %1184
    %1187 = vset.pattern.permute.xlu0 4
    %1188 = vperm.xlu0 %1187, %v63
    %v1189 = vpop.permute.xlu0 %1188
    %1191 = vset.pattern.permute.xlu0 4
    %1192 = vperm.xlu0 %1191, %v64
    %v1193 = vpop.permute.xlu0 %1192
    %v1195 = vlaneseq
    %v1196 = vshrl.u32 %v1195, 7
    %v1197 = vsub.s32 0, %v1196
    %v1198 = vrot.slane %v1042, %v1197
    %v1199 = vmul.f32 %v1045, %v1198
    %v1200 = vmul.f32 %v1049, %v1198
    %v1201 = vmul.f32 %v1053, %v1198
    %v1202 = vmul.f32 %v1057, %v1198
    %v1203 = vmul.f32 %v1061, %v1198
    %v1204 = vmul.f32 %v1065, %v1198
    %v1205 = vmul.f32 %v1069, %v1198
    %v1206 = vmul.f32 %v1073, %v1198
    %v1207 = vmul.f32 %v1077, %v1198
    %v1208 = vmul.f32 %v1081, %v1198
    %v1209 = vmul.f32 %v1085, %v1198
    %v1210 = vmul.f32 %v1089, %v1198
    %v1211 = vmul.f32 %v1093, %v1198
    %v1212 = vmul.f32 %v1097, %v1198
    %v1213 = vmul.f32 %v1101, %v1198
    %v1214 = vmul.f32 %v1105, %v1198
    %v1215 = vmul.f32 %v1109, %v1198
    %v1216 = vmul.f32 %v1113, %v1198
    %v1217 = vmul.f32 %v1117, %v1198
    %v1218 = vmul.f32 %v1121, %v1198
    %v1219 = vmul.f32 %v1125, %v1198
    %v1220 = vmul.f32 %v1129, %v1198
    %v1221 = vmul.f32 %v1133, %v1198
    %v1222 = vmul.f32 %v1137, %v1198
    %v1223 = vmul.f32 %v1141, %v1198
    %v1224 = vmul.f32 %v1145, %v1198
    %v1225 = vmul.f32 %v1149, %v1198
    %v1226 = vmul.f32 %v1153, %v1198
    %v1227 = vmul.f32 %v1157, %v1198
    %v1228 = vmul.f32 %v1161, %v1198
    %v1229 = vmul.f32 %v1165, %v1198
    %v1230 = vmul.f32 %v1169, %v1198
    %v1231 = vmul.f32 %v1173, %v1198
    %v1232 = vmul.f32 %v1177, %v1198
    %v1233 = vmul.f32 %v1181, %v1198
    %v1234 = vmul.f32 %v1185, %v1198
    %v1235 = vmul.f32 %v1189, %v1198
    %v1236 = vmul.f32 %v1193, %v1198
    %v1237 = vadd.f32 %v1004, %v1199
    %v1238 = vadd.f32 %v1005, %v1200
    %v1239 = vadd.f32 %v1006, %v1201
    %v1240 = vadd.f32 %v1007, %v1202
    %v1241 = vadd.f32 %v1008, %v1203
    %v1242 = vadd.f32 %v1009, %v1204
    %v1243 = vadd.f32 %v1010, %v1205
    %v1244 = vadd.f32 %v1011, %v1206
    %v1245 = vadd.f32 %v1012, %v1207
    %v1246 = vadd.f32 %v1013, %v1208
    %v1247 = vadd.f32 %v1014, %v1209
    %v1248 = vadd.f32 %v1015, %v1210
    %v1249 = vadd.f32 %v1016, %v1211
    %v1250 = vadd.f32 %v1017, %v1212
    %v1251 = vadd.f32 %v1018, %v1213
    %v1252 = vadd.f32 %v1019, %v1214
    %v1253 = vadd.f32 %v1020, %v1215
    %v1254 = vadd.f32 %v1021, %v1216
    %v1255 = vadd.f32 %v1022, %v1217
    %v1256 = vadd.f32 %v1023, %v1218
    %v1257 = vadd.f32 %v1024, %v1219
    %v1258 = vadd.f32 %v1025, %v1220
    %v1259 = vadd.f32 %v1026, %v1221
    %v1260 = vadd.f32 %v1027, %v1222
    %v1261 = vadd.f32 %v1028, %v1223
    %v1262 = vadd.f32 %v1029, %v1224
    %v1263 = vadd.f32 %v1030, %v1225
    %v1264 = vadd.f32 %v1031, %v1226
    %v1265 = vadd.f32 %v1032, %v1227
    %v1266 = vadd.f32 %v1033, %v1228
    %v1267 = vadd.f32 %v1034, %v1229
    %v1268 = vadd.f32 %v1035, %v1230
    %v1269 = vadd.f32 %v1036, %v1231
    %v1270 = vadd.f32 %v1037, %v1232
    %v1271 = vadd.f32 %v1038, %v1233
    %v1272 = vadd.f32 %v1039, %v1234
    %v1273 = vadd.f32 %v1040, %v1235
    %v1274 = vadd.f32 %v1041, %v1236
    %v1275 = vld [vmem:[%s1 + $0x5] sm:$0x1]
    %1276 = vset.pattern.permute.xlu0 5
    %1277 = vperm.xlu0 %1276, %v27
    %v1278 = vpop.permute.xlu0 %1277
    %1280 = vset.pattern.permute.xlu0 5
    %1281 = vperm.xlu0 %1280, %v28
    %v1282 = vpop.permute.xlu0 %1281
    %1284 = vset.pattern.permute.xlu0 5
    %1285 = vperm.xlu0 %1284, %v29
    %v1286 = vpop.permute.xlu0 %1285
    %1288 = vset.pattern.permute.xlu0 5
    %1289 = vperm.xlu0 %1288, %v30
    %v1290 = vpop.permute.xlu0 %1289
    %1292 = vset.pattern.permute.xlu0 5
    %1293 = vperm.xlu0 %1292, %v31
    %v1294 = vpop.permute.xlu0 %1293
    %1296 = vset.pattern.permute.xlu0 5
    %1297 = vperm.xlu0 %1296, %v32
    %v1298 = vpop.permute.xlu0 %1297
    %1300 = vset.pattern.permute.xlu0 5
    %1301 = vperm.xlu0 %1300, %v33
    %v1302 = vpop.permute.xlu0 %1301
    %1304 = vset.pattern.permute.xlu0 5
    %1305 = vperm.xlu0 %1304, %v34
    %v1306 = vpop.permute.xlu0 %1305
    %1308 = vset.pattern.permute.xlu0 5
    %1309 = vperm.xlu0 %1308, %v35
    %v1310 = vpop.permute.xlu0 %1309
    %1312 = vset.pattern.permute.xlu0 5
    %1313 = vperm.xlu0 %1312, %v36
    %v1314 = vpop.permute.xlu0 %1313
    %1316 = vset.pattern.permute.xlu0 5
    %1317 = vperm.xlu0 %1316, %v37
    %v1318 = vpop.permute.xlu0 %1317
    %1320 = vset.pattern.permute.xlu0 5
    %1321 = vperm.xlu0 %1320, %v38
    %v1322 = vpop.permute.xlu0 %1321
    %1324 = vset.pattern.permute.xlu0 5
    %1325 = vperm.xlu0 %1324, %v39
    %v1326 = vpop.permute.xlu0 %1325
    %1328 = vset.pattern.permute.xlu0 5
    %1329 = vperm.xlu0 %1328, %v40
    %v1330 = vpop.permute.xlu0 %1329
    %1332 = vset.pattern.permute.xlu0 5
    %1333 = vperm.xlu0 %1332, %v41
    %v1334 = vpop.permute.xlu0 %1333
    %1336 = vset.pattern.permute.xlu0 5
    %1337 = vperm.xlu0 %1336, %v42
    %v1338 = vpop.permute.xlu0 %1337
    %1340 = vset.pattern.permute.xlu0 5
    %1341 = vperm.xlu0 %1340, %v43
    %v1342 = vpop.permute.xlu0 %1341
    %1344 = vset.pattern.permute.xlu0 5
    %1345 = vperm.xlu0 %1344, %v44
    %v1346 = vpop.permute.xlu0 %1345
    %1348 = vset.pattern.permute.xlu0 5
    %1349 = vperm.xlu0 %1348, %v45
    %v1350 = vpop.permute.xlu0 %1349
    %1352 = vset.pattern.permute.xlu0 5
    %1353 = vperm.xlu0 %1352, %v46
    %v1354 = vpop.permute.xlu0 %1353
    %1356 = vset.pattern.permute.xlu0 5
    %1357 = vperm.xlu0 %1356, %v47
    %v1358 = vpop.permute.xlu0 %1357
    %1360 = vset.pattern.permute.xlu0 5
    %1361 = vperm.xlu0 %1360, %v48
    %v1362 = vpop.permute.xlu0 %1361
    %1364 = vset.pattern.permute.xlu0 5
    %1365 = vperm.xlu0 %1364, %v49
    %v1366 = vpop.permute.xlu0 %1365
    %1368 = vset.pattern.permute.xlu0 5
    %1369 = vperm.xlu0 %1368, %v50
    %v1370 = vpop.permute.xlu0 %1369
    %1372 = vset.pattern.permute.xlu0 5
    %1373 = vperm.xlu0 %1372, %v51
    %v1374 = vpop.permute.xlu0 %1373
    %1376 = vset.pattern.permute.xlu0 5
    %1377 = vperm.xlu0 %1376, %v52
    %v1378 = vpop.permute.xlu0 %1377
    %1380 = vset.pattern.permute.xlu0 5
    %1381 = vperm.xlu0 %1380, %v53
    %v1382 = vpop.permute.xlu0 %1381
    %1384 = vset.pattern.permute.xlu0 5
    %1385 = vperm.xlu0 %1384, %v54
    %v1386 = vpop.permute.xlu0 %1385
    %1388 = vset.pattern.permute.xlu0 5
    %1389 = vperm.xlu0 %1388, %v55
    %v1390 = vpop.permute.xlu0 %1389
    %1392 = vset.pattern.permute.xlu0 5
    %1393 = vperm.xlu0 %1392, %v56
    %v1394 = vpop.permute.xlu0 %1393
    %1396 = vset.pattern.permute.xlu0 5
    %1397 = vperm.xlu0 %1396, %v57
    %v1398 = vpop.permute.xlu0 %1397
    %1400 = vset.pattern.permute.xlu0 5
    %1401 = vperm.xlu0 %1400, %v58
    %v1402 = vpop.permute.xlu0 %1401
    %1404 = vset.pattern.permute.xlu0 5
    %1405 = vperm.xlu0 %1404, %v59
    %v1406 = vpop.permute.xlu0 %1405
    %1408 = vset.pattern.permute.xlu0 5
    %1409 = vperm.xlu0 %1408, %v60
    %v1410 = vpop.permute.xlu0 %1409
    %1412 = vset.pattern.permute.xlu0 5
    %1413 = vperm.xlu0 %1412, %v61
    %v1414 = vpop.permute.xlu0 %1413
    %1416 = vset.pattern.permute.xlu0 5
    %1417 = vperm.xlu0 %1416, %v62
    %v1418 = vpop.permute.xlu0 %1417
    %1420 = vset.pattern.permute.xlu0 5
    %1421 = vperm.xlu0 %1420, %v63
    %v1422 = vpop.permute.xlu0 %1421
    %1424 = vset.pattern.permute.xlu0 5
    %1425 = vperm.xlu0 %1424, %v64
    %v1426 = vpop.permute.xlu0 %1425
    %v1428 = vlaneseq
    %v1429 = vshrl.u32 %v1428, 7
    %v1430 = vsub.s32 0, %v1429
    %v1431 = vrot.slane %v1275, %v1430
    %v1432 = vmul.f32 %v1278, %v1431
    %v1433 = vmul.f32 %v1282, %v1431
    %v1434 = vmul.f32 %v1286, %v1431
    %v1435 = vmul.f32 %v1290, %v1431
    %v1436 = vmul.f32 %v1294, %v1431
    %v1437 = vmul.f32 %v1298, %v1431
    %v1438 = vmul.f32 %v1302, %v1431
    %v1439 = vmul.f32 %v1306, %v1431
    %v1440 = vmul.f32 %v1310, %v1431
    %v1441 = vmul.f32 %v1314, %v1431
    %v1442 = vmul.f32 %v1318, %v1431
    %v1443 = vmul.f32 %v1322, %v1431
    %v1444 = vmul.f32 %v1326, %v1431
    %v1445 = vmul.f32 %v1330, %v1431
    %v1446 = vmul.f32 %v1334, %v1431
    %v1447 = vmul.f32 %v1338, %v1431
    %v1448 = vmul.f32 %v1342, %v1431
    %v1449 = vmul.f32 %v1346, %v1431
    %v1450 = vmul.f32 %v1350, %v1431
    %v1451 = vmul.f32 %v1354, %v1431
    %v1452 = vmul.f32 %v1358, %v1431
    %v1453 = vmul.f32 %v1362, %v1431
    %v1454 = vmul.f32 %v1366, %v1431
    %v1455 = vmul.f32 %v1370, %v1431
    %v1456 = vmul.f32 %v1374, %v1431
    %v1457 = vmul.f32 %v1378, %v1431
    %v1458 = vmul.f32 %v1382, %v1431
    %v1459 = vmul.f32 %v1386, %v1431
    %v1460 = vmul.f32 %v1390, %v1431
    %v1461 = vmul.f32 %v1394, %v1431
    %v1462 = vmul.f32 %v1398, %v1431
    %v1463 = vmul.f32 %v1402, %v1431
    %v1464 = vmul.f32 %v1406, %v1431
    %v1465 = vmul.f32 %v1410, %v1431
    %v1466 = vmul.f32 %v1414, %v1431
    %v1467 = vmul.f32 %v1418, %v1431
    %v1468 = vmul.f32 %v1422, %v1431
    %v1469 = vmul.f32 %v1426, %v1431
    %v1470 = vadd.f32 %v1237, %v1432
    %v1471 = vadd.f32 %v1238, %v1433
    %v1472 = vadd.f32 %v1239, %v1434
    %v1473 = vadd.f32 %v1240, %v1435
    %v1474 = vadd.f32 %v1241, %v1436
    %v1475 = vadd.f32 %v1242, %v1437
    %v1476 = vadd.f32 %v1243, %v1438
    %v1477 = vadd.f32 %v1244, %v1439
    %v1478 = vadd.f32 %v1245, %v1440
    %v1479 = vadd.f32 %v1246, %v1441
    %v1480 = vadd.f32 %v1247, %v1442
    %v1481 = vadd.f32 %v1248, %v1443
    %v1482 = vadd.f32 %v1249, %v1444
    %v1483 = vadd.f32 %v1250, %v1445
    %v1484 = vadd.f32 %v1251, %v1446
    %v1485 = vadd.f32 %v1252, %v1447
    %v1486 = vadd.f32 %v1253, %v1448
    %v1487 = vadd.f32 %v1254, %v1449
    %v1488 = vadd.f32 %v1255, %v1450
    %v1489 = vadd.f32 %v1256, %v1451
    %v1490 = vadd.f32 %v1257, %v1452
    %v1491 = vadd.f32 %v1258, %v1453
    %v1492 = vadd.f32 %v1259, %v1454
    %v1493 = vadd.f32 %v1260, %v1455
    %v1494 = vadd.f32 %v1261, %v1456
    %v1495 = vadd.f32 %v1262, %v1457
    %v1496 = vadd.f32 %v1263, %v1458
    %v1497 = vadd.f32 %v1264, %v1459
    %v1498 = vadd.f32 %v1265, %v1460
    %v1499 = vadd.f32 %v1266, %v1461
    %v1500 = vadd.f32 %v1267, %v1462
    %v1501 = vadd.f32 %v1268, %v1463
    %v1502 = vadd.f32 %v1269, %v1464
    %v1503 = vadd.f32 %v1270, %v1465
    %v1504 = vadd.f32 %v1271, %v1466
    %v1505 = vadd.f32 %v1272, %v1467
    %v1506 = vadd.f32 %v1273, %v1468
    %v1507 = vadd.f32 %v1274, %v1469
    %v1508 = vld [vmem:[%s1 + $0x6] sm:$0x1]
    %1509 = vset.pattern.permute.xlu0 6
    %1510 = vperm.xlu0 %1509, %v27
    %v1511 = vpop.permute.xlu0 %1510
    %1513 = vset.pattern.permute.xlu0 6
    %1514 = vperm.xlu0 %1513, %v28
    %v1515 = vpop.permute.xlu0 %1514
    %1517 = vset.pattern.permute.xlu0 6
    %1518 = vperm.xlu0 %1517, %v29
    %v1519 = vpop.permute.xlu0 %1518
    %1521 = vset.pattern.permute.xlu0 6
    %1522 = vperm.xlu0 %1521, %v30
    %v1523 = vpop.permute.xlu0 %1522
    %1525 = vset.pattern.permute.xlu0 6
    %1526 = vperm.xlu0 %1525, %v31
    %v1527 = vpop.permute.xlu0 %1526
    %1529 = vset.pattern.permute.xlu0 6
    %1530 = vperm.xlu0 %1529, %v32
    %v1531 = vpop.permute.xlu0 %1530
    %1533 = vset.pattern.permute.xlu0 6
    %1534 = vperm.xlu0 %1533, %v33
    %v1535 = vpop.permute.xlu0 %1534
    %1537 = vset.pattern.permute.xlu0 6
    %1538 = vperm.xlu0 %1537, %v34
    %v1539 = vpop.permute.xlu0 %1538
    %1541 = vset.pattern.permute.xlu0 6
    %1542 = vperm.xlu0 %1541, %v35
    %v1543 = vpop.permute.xlu0 %1542
    %1545 = vset.pattern.permute.xlu0 6
    %1546 = vperm.xlu0 %1545, %v36
    %v1547 = vpop.permute.xlu0 %1546
    %1549 = vset.pattern.permute.xlu0 6
    %1550 = vperm.xlu0 %1549, %v37
    %v1551 = vpop.permute.xlu0 %1550
    %1553 = vset.pattern.permute.xlu0 6
    %1554 = vperm.xlu0 %1553, %v38
    %v1555 = vpop.permute.xlu0 %1554
    %1557 = vset.pattern.permute.xlu0 6
    %1558 = vperm.xlu0 %1557, %v39
    %v1559 = vpop.permute.xlu0 %1558
    %1561 = vset.pattern.permute.xlu0 6
    %1562 = vperm.xlu0 %1561, %v40
    %v1563 = vpop.permute.xlu0 %1562
    %1565 = vset.pattern.permute.xlu0 6
    %1566 = vperm.xlu0 %1565, %v41
    %v1567 = vpop.permute.xlu0 %1566
    %1569 = vset.pattern.permute.xlu0 6
    %1570 = vperm.xlu0 %1569, %v42
    %v1571 = vpop.permute.xlu0 %1570
    %1573 = vset.pattern.permute.xlu0 6
    %1574 = vperm.xlu0 %1573, %v43
    %v1575 = vpop.permute.xlu0 %1574
    %1577 = vset.pattern.permute.xlu0 6
    %1578 = vperm.xlu0 %1577, %v44
    %v1579 = vpop.permute.xlu0 %1578
    %1581 = vset.pattern.permute.xlu0 6
    %1582 = vperm.xlu0 %1581, %v45
    %v1583 = vpop.permute.xlu0 %1582
    %1585 = vset.pattern.permute.xlu0 6
    %1586 = vperm.xlu0 %1585, %v46
    %v1587 = vpop.permute.xlu0 %1586
    %1589 = vset.pattern.permute.xlu0 6
    %1590 = vperm.xlu0 %1589, %v47
    %v1591 = vpop.permute.xlu0 %1590
    %1593 = vset.pattern.permute.xlu0 6
    %1594 = vperm.xlu0 %1593, %v48
    %v1595 = vpop.permute.xlu0 %1594
    %1597 = vset.pattern.permute.xlu0 6
    %1598 = vperm.xlu0 %1597, %v49
    %v1599 = vpop.permute.xlu0 %1598
    %1601 = vset.pattern.permute.xlu0 6
    %1602 = vperm.xlu0 %1601, %v50
    %v1603 = vpop.permute.xlu0 %1602
    %1605 = vset.pattern.permute.xlu0 6
    %1606 = vperm.xlu0 %1605, %v51
    %v1607 = vpop.permute.xlu0 %1606
    %1609 = vset.pattern.permute.xlu0 6
    %1610 = vperm.xlu0 %1609, %v52
    %v1611 = vpop.permute.xlu0 %1610
    %1613 = vset.pattern.permute.xlu0 6
    %1614 = vperm.xlu0 %1613, %v53
    %v1615 = vpop.permute.xlu0 %1614
    %1617 = vset.pattern.permute.xlu0 6
    %1618 = vperm.xlu0 %1617, %v54
    %v1619 = vpop.permute.xlu0 %1618
    %1621 = vset.pattern.permute.xlu0 6
    %1622 = vperm.xlu0 %1621, %v55
    %v1623 = vpop.permute.xlu0 %1622
    %1625 = vset.pattern.permute.xlu0 6
    %1626 = vperm.xlu0 %1625, %v56
    %v1627 = vpop.permute.xlu0 %1626
    %1629 = vset.pattern.permute.xlu0 6
    %1630 = vperm.xlu0 %1629, %v57
    %v1631 = vpop.permute.xlu0 %1630
    %1633 = vset.pattern.permute.xlu0 6
    %1634 = vperm.xlu0 %1633, %v58
    %v1635 = vpop.permute.xlu0 %1634
    %1637 = vset.pattern.permute.xlu0 6
    %1638 = vperm.xlu0 %1637, %v59
    %v1639 = vpop.permute.xlu0 %1638
    %1641 = vset.pattern.permute.xlu0 6
    %1642 = vperm.xlu0 %1641, %v60
    %v1643 = vpop.permute.xlu0 %1642
    %1645 = vset.pattern.permute.xlu0 6
    %1646 = vperm.xlu0 %1645, %v61
    %v1647 = vpop.permute.xlu0 %1646
    %1649 = vset.pattern.permute.xlu0 6
    %1650 = vperm.xlu0 %1649, %v62
    %v1651 = vpop.permute.xlu0 %1650
    %1653 = vset.pattern.permute.xlu0 6
    %1654 = vperm.xlu0 %1653, %v63
    %v1655 = vpop.permute.xlu0 %1654
    %1657 = vset.pattern.permute.xlu0 6
    %1658 = vperm.xlu0 %1657, %v64
    %v1659 = vpop.permute.xlu0 %1658
    %v1661 = vlaneseq
    %v1662 = vshrl.u32 %v1661, 7
    %v1663 = vsub.s32 0, %v1662
    %v1664 = vrot.slane %v1508, %v1663
    %v1665 = vmul.f32 %v1511, %v1664
    %v1666 = vmul.f32 %v1515, %v1664
    %v1667 = vmul.f32 %v1519, %v1664
    %v1668 = vmul.f32 %v1523, %v1664
    %v1669 = vmul.f32 %v1527, %v1664
    %v1670 = vmul.f32 %v1531, %v1664
    %v1671 = vmul.f32 %v1535, %v1664
    %v1672 = vmul.f32 %v1539, %v1664
    %v1673 = vmul.f32 %v1543, %v1664
    %v1674 = vmul.f32 %v1547, %v1664
    %v1675 = vmul.f32 %v1551, %v1664
    %v1676 = vmul.f32 %v1555, %v1664
    %v1677 = vmul.f32 %v1559, %v1664
    %v1678 = vmul.f32 %v1563, %v1664
    %v1679 = vmul.f32 %v1567, %v1664
    %v1680 = vmul.f32 %v1571, %v1664
    %v1681 = vmul.f32 %v1575, %v1664
    %v1682 = vmul.f32 %v1579, %v1664
    %v1683 = vmul.f32 %v1583, %v1664
    %v1684 = vmul.f32 %v1587, %v1664
    %v1685 = vmul.f32 %v1591, %v1664
    %v1686 = vmul.f32 %v1595, %v1664
    %v1687 = vmul.f32 %v1599, %v1664
    %v1688 = vmul.f32 %v1603, %v1664
    %v1689 = vmul.f32 %v1607, %v1664
    %v1690 = vmul.f32 %v1611, %v1664
    %v1691 = vmul.f32 %v1615, %v1664
    %v1692 = vmul.f32 %v1619, %v1664
    %v1693 = vmul.f32 %v1623, %v1664
    %v1694 = vmul.f32 %v1627, %v1664
    %v1695 = vmul.f32 %v1631, %v1664
    %v1696 = vmul.f32 %v1635, %v1664
    %v1697 = vmul.f32 %v1639, %v1664
    %v1698 = vmul.f32 %v1643, %v1664
    %v1699 = vmul.f32 %v1647, %v1664
    %v1700 = vmul.f32 %v1651, %v1664
    %v1701 = vmul.f32 %v1655, %v1664
    %v1702 = vmul.f32 %v1659, %v1664
    %v1703 = vadd.f32 %v1470, %v1665
    %v1704 = vadd.f32 %v1471, %v1666
    %v1705 = vadd.f32 %v1472, %v1667
    %v1706 = vadd.f32 %v1473, %v1668
    %v1707 = vadd.f32 %v1474, %v1669
    %v1708 = vadd.f32 %v1475, %v1670
    %v1709 = vadd.f32 %v1476, %v1671
    %v1710 = vadd.f32 %v1477, %v1672
    %v1711 = vadd.f32 %v1478, %v1673
    %v1712 = vadd.f32 %v1479, %v1674
    %v1713 = vadd.f32 %v1480, %v1675
    %v1714 = vadd.f32 %v1481, %v1676
    %v1715 = vadd.f32 %v1482, %v1677
    %v1716 = vadd.f32 %v1483, %v1678
    %v1717 = vadd.f32 %v1484, %v1679
    %v1718 = vadd.f32 %v1485, %v1680
    %v1719 = vadd.f32 %v1486, %v1681
    %v1720 = vadd.f32 %v1487, %v1682
    %v1721 = vadd.f32 %v1488, %v1683
    %v1722 = vadd.f32 %v1489, %v1684
    %v1723 = vadd.f32 %v1490, %v1685
    %v1724 = vadd.f32 %v1491, %v1686
    %v1725 = vadd.f32 %v1492, %v1687
    %v1726 = vadd.f32 %v1493, %v1688
    %v1727 = vadd.f32 %v1494, %v1689
    %v1728 = vadd.f32 %v1495, %v1690
    %v1729 = vadd.f32 %v1496, %v1691
    %v1730 = vadd.f32 %v1497, %v1692
    %v1731 = vadd.f32 %v1498, %v1693
    %v1732 = vadd.f32 %v1499, %v1694
    %v1733 = vadd.f32 %v1500, %v1695
    %v1734 = vadd.f32 %v1501, %v1696
    %v1735 = vadd.f32 %v1502, %v1697
    %v1736 = vadd.f32 %v1503, %v1698
    %v1737 = vadd.f32 %v1504, %v1699
    %v1738 = vadd.f32 %v1505, %v1700
    %v1739 = vadd.f32 %v1506, %v1701
    %v1740 = vadd.f32 %v1507, %v1702
    %v1741 = vld [vmem:[%s1 + $0x7] sm:$0x1]
    %1742 = vset.pattern.permute.xlu0 7
    %1743 = vperm.xlu0 %1742, %v27
    %v1744 = vpop.permute.xlu0 %1743
    %1746 = vset.pattern.permute.xlu0 7
    %1747 = vperm.xlu0 %1746, %v28
    %v1748 = vpop.permute.xlu0 %1747
    %1750 = vset.pattern.permute.xlu0 7
    %1751 = vperm.xlu0 %1750, %v29
    %v1752 = vpop.permute.xlu0 %1751
    %1754 = vset.pattern.permute.xlu0 7
    %1755 = vperm.xlu0 %1754, %v30
    %v1756 = vpop.permute.xlu0 %1755
    %1758 = vset.pattern.permute.xlu0 7
    %1759 = vperm.xlu0 %1758, %v31
    %v1760 = vpop.permute.xlu0 %1759
    %1762 = vset.pattern.permute.xlu0 7
    %1763 = vperm.xlu0 %1762, %v32
    %v1764 = vpop.permute.xlu0 %1763
    %1766 = vset.pattern.permute.xlu0 7
    %1767 = vperm.xlu0 %1766, %v33
    %v1768 = vpop.permute.xlu0 %1767
    %1770 = vset.pattern.permute.xlu0 7
    %1771 = vperm.xlu0 %1770, %v34
    %v1772 = vpop.permute.xlu0 %1771
    %1774 = vset.pattern.permute.xlu0 7
    %1775 = vperm.xlu0 %1774, %v35
    %v1776 = vpop.permute.xlu0 %1775
    %1778 = vset.pattern.permute.xlu0 7
    %1779 = vperm.xlu0 %1778, %v36
    %v1780 = vpop.permute.xlu0 %1779
    %1782 = vset.pattern.permute.xlu0 7
    %1783 = vperm.xlu0 %1782, %v37
    %v1784 = vpop.permute.xlu0 %1783
    %1786 = vset.pattern.permute.xlu0 7
    %1787 = vperm.xlu0 %1786, %v38
    %v1788 = vpop.permute.xlu0 %1787
    %1790 = vset.pattern.permute.xlu0 7
    %1791 = vperm.xlu0 %1790, %v39
    %v1792 = vpop.permute.xlu0 %1791
    %1794 = vset.pattern.permute.xlu0 7
    %1795 = vperm.xlu0 %1794, %v40
    %v1796 = vpop.permute.xlu0 %1795
    %1798 = vset.pattern.permute.xlu0 7
    %1799 = vperm.xlu0 %1798, %v41
    %v1800 = vpop.permute.xlu0 %1799
    %1802 = vset.pattern.permute.xlu0 7
    %1803 = vperm.xlu0 %1802, %v42
    %v1804 = vpop.permute.xlu0 %1803
    %1806 = vset.pattern.permute.xlu0 7
    %1807 = vperm.xlu0 %1806, %v43
    %v1808 = vpop.permute.xlu0 %1807
    %1810 = vset.pattern.permute.xlu0 7
    %1811 = vperm.xlu0 %1810, %v44
    %v1812 = vpop.permute.xlu0 %1811
    %1814 = vset.pattern.permute.xlu0 7
    %1815 = vperm.xlu0 %1814, %v45
    %v1816 = vpop.permute.xlu0 %1815
    %1818 = vset.pattern.permute.xlu0 7
    %1819 = vperm.xlu0 %1818, %v46
    %v1820 = vpop.permute.xlu0 %1819
    %1822 = vset.pattern.permute.xlu0 7
    %1823 = vperm.xlu0 %1822, %v47
    %v1824 = vpop.permute.xlu0 %1823
    %1826 = vset.pattern.permute.xlu0 7
    %1827 = vperm.xlu0 %1826, %v48
    %v1828 = vpop.permute.xlu0 %1827
    %1830 = vset.pattern.permute.xlu0 7
    %1831 = vperm.xlu0 %1830, %v49
    %v1832 = vpop.permute.xlu0 %1831
    %1834 = vset.pattern.permute.xlu0 7
    %1835 = vperm.xlu0 %1834, %v50
    %v1836 = vpop.permute.xlu0 %1835
    %1838 = vset.pattern.permute.xlu0 7
    %1839 = vperm.xlu0 %1838, %v51
    %v1840 = vpop.permute.xlu0 %1839
    %1842 = vset.pattern.permute.xlu0 7
    %1843 = vperm.xlu0 %1842, %v52
    %v1844 = vpop.permute.xlu0 %1843
    %1846 = vset.pattern.permute.xlu0 7
    %1847 = vperm.xlu0 %1846, %v53
    %v1848 = vpop.permute.xlu0 %1847
    %1850 = vset.pattern.permute.xlu0 7
    %1851 = vperm.xlu0 %1850, %v54
    %v1852 = vpop.permute.xlu0 %1851
    %1854 = vset.pattern.permute.xlu0 7
    %1855 = vperm.xlu0 %1854, %v55
    %v1856 = vpop.permute.xlu0 %1855
    %1858 = vset.pattern.permute.xlu0 7
    %1859 = vperm.xlu0 %1858, %v56
    %v1860 = vpop.permute.xlu0 %1859
    %1862 = vset.pattern.permute.xlu0 7
    %1863 = vperm.xlu0 %1862, %v57
    %v1864 = vpop.permute.xlu0 %1863
    %1866 = vset.pattern.permute.xlu0 7
    %1867 = vperm.xlu0 %1866, %v58
    %v1868 = vpop.permute.xlu0 %1867
    %1870 = vset.pattern.permute.xlu0 7
    %1871 = vperm.xlu0 %1870, %v59
    %v1872 = vpop.permute.xlu0 %1871
    %1874 = vset.pattern.permute.xlu0 7
    %1875 = vperm.xlu0 %1874, %v60
    %v1876 = vpop.permute.xlu0 %1875
    %1878 = vset.pattern.permute.xlu0 7
    %1879 = vperm.xlu0 %1878, %v61
    %v1880 = vpop.permute.xlu0 %1879
    %1882 = vset.pattern.permute.xlu0 7
    %1883 = vperm.xlu0 %1882, %v62
    %v1884 = vpop.permute.xlu0 %1883
    %1886 = vset.pattern.permute.xlu0 7
    %1887 = vperm.xlu0 %1886, %v63
    %v1888 = vpop.permute.xlu0 %1887
    %1890 = vset.pattern.permute.xlu0 7
    %1891 = vperm.xlu0 %1890, %v64
    %v1892 = vpop.permute.xlu0 %1891
    %v1894 = vlaneseq
    %v1895 = vshrl.u32 %v1894, 7
    %v1896 = vsub.s32 0, %v1895
    %v1897 = vrot.slane %v1741, %v1896
    %v1898 = vmul.f32 %v1744, %v1897
    %v1899 = vmul.f32 %v1748, %v1897
    %v1900 = vmul.f32 %v1752, %v1897
    %v1901 = vmul.f32 %v1756, %v1897
    %v1902 = vmul.f32 %v1760, %v1897
    %v1903 = vmul.f32 %v1764, %v1897
    %v1904 = vmul.f32 %v1768, %v1897
    %v1905 = vmul.f32 %v1772, %v1897
    %v1906 = vmul.f32 %v1776, %v1897
    %v1907 = vmul.f32 %v1780, %v1897
    %v1908 = vmul.f32 %v1784, %v1897
    %v1909 = vmul.f32 %v1788, %v1897
    %v1910 = vmul.f32 %v1792, %v1897
    %v1911 = vmul.f32 %v1796, %v1897
    %v1912 = vmul.f32 %v1800, %v1897
    %v1913 = vmul.f32 %v1804, %v1897
    %v1914 = vmul.f32 %v1808, %v1897
    %v1915 = vmul.f32 %v1812, %v1897
    %v1916 = vmul.f32 %v1816, %v1897
    %v1917 = vmul.f32 %v1820, %v1897
    %v1918 = vmul.f32 %v1824, %v1897
    %v1919 = vmul.f32 %v1828, %v1897
    %v1920 = vmul.f32 %v1832, %v1897
    %v1921 = vmul.f32 %v1836, %v1897
    %v1922 = vmul.f32 %v1840, %v1897
    %v1923 = vmul.f32 %v1844, %v1897
    %v1924 = vmul.f32 %v1848, %v1897
    %v1925 = vmul.f32 %v1852, %v1897
    %v1926 = vmul.f32 %v1856, %v1897
    %v1927 = vmul.f32 %v1860, %v1897
    %v1928 = vmul.f32 %v1864, %v1897
    %v1929 = vmul.f32 %v1868, %v1897
    %v1930 = vmul.f32 %v1872, %v1897
    %v1931 = vmul.f32 %v1876, %v1897
    %v1932 = vmul.f32 %v1880, %v1897
    %v1933 = vmul.f32 %v1884, %v1897
    %v1934 = vmul.f32 %v1888, %v1897
    %v1935 = vmul.f32 %v1892, %v1897
    %v1936 = vadd.f32 %v1703, %v1898
    %v1937 = vadd.f32 %v1704, %v1899
    %v1938 = vadd.f32 %v1705, %v1900
    %v1939 = vadd.f32 %v1706, %v1901
    %v1940 = vadd.f32 %v1707, %v1902
    %v1941 = vadd.f32 %v1708, %v1903
    %v1942 = vadd.f32 %v1709, %v1904
    %v1943 = vadd.f32 %v1710, %v1905
    %v1944 = vadd.f32 %v1711, %v1906
    %v1945 = vadd.f32 %v1712, %v1907
    %v1946 = vadd.f32 %v1713, %v1908
    %v1947 = vadd.f32 %v1714, %v1909
    %v1948 = vadd.f32 %v1715, %v1910
    %v1949 = vadd.f32 %v1716, %v1911
    %v1950 = vadd.f32 %v1717, %v1912
    %v1951 = vadd.f32 %v1718, %v1913
    %v1952 = vadd.f32 %v1719, %v1914
    %v1953 = vadd.f32 %v1720, %v1915
    %v1954 = vadd.f32 %v1721, %v1916
    %v1955 = vadd.f32 %v1722, %v1917
    %v1956 = vadd.f32 %v1723, %v1918
    %v1957 = vadd.f32 %v1724, %v1919
    %v1958 = vadd.f32 %v1725, %v1920
    %v1959 = vadd.f32 %v1726, %v1921
    %v1960 = vadd.f32 %v1727, %v1922
    %v1961 = vadd.f32 %v1728, %v1923
    %v1962 = vadd.f32 %v1729, %v1924
    %v1963 = vadd.f32 %v1730, %v1925
    %v1964 = vadd.f32 %v1731, %v1926
    %v1965 = vadd.f32 %v1732, %v1927
    %v1966 = vadd.f32 %v1733, %v1928
    %v1967 = vadd.f32 %v1734, %v1929
    %v1968 = vadd.f32 %v1735, %v1930
    %v1969 = vadd.f32 %v1736, %v1931
    %v1970 = vadd.f32 %v1737, %v1932
    %v1971 = vadd.f32 %v1738, %v1933
    %v1972 = vadd.f32 %v1739, %v1934
    %v1973 = vadd.f32 %v1740, %v1935
    %v1974 = vmax.f32 %v1936, 0.0
    %v1975 = vmax.f32 %v1937, 0.0
    %v1976 = vmax.f32 %v1938, 0.0
    %v1977 = vmax.f32 %v1939, 0.0
    %v1978 = vmax.f32 %v1940, 0.0
    %v1979 = vmax.f32 %v1941, 0.0
    %v1980 = vmax.f32 %v1942, 0.0
    %v1981 = vmax.f32 %v1943, 0.0
    %v1982 = vmax.f32 %v1944, 0.0
    %v1983 = vmax.f32 %v1945, 0.0
    %v1984 = vmax.f32 %v1946, 0.0
    %v1985 = vmax.f32 %v1947, 0.0
    %v1986 = vmax.f32 %v1948, 0.0
    %v1987 = vmax.f32 %v1949, 0.0
    %v1988 = vmax.f32 %v1950, 0.0
    %v1989 = vmax.f32 %v1951, 0.0
    %v1990 = vmax.f32 %v1952, 0.0
    %v1991 = vmax.f32 %v1953, 0.0
    %v1992 = vmax.f32 %v1954, 0.0
    %v1993 = vmax.f32 %v1955, 0.0
    %v1994 = vmax.f32 %v1956, 0.0
    %v1995 = vmax.f32 %v1957, 0.0
    %v1996 = vmax.f32 %v1958, 0.0
    %v1997 = vmax.f32 %v1959, 0.0
    %v1998 = vmax.f32 %v1960, 0.0
    %v1999 = vmax.f32 %v1961, 0.0
    %v2000 = vmax.f32 %v1962, 0.0
    %v2001 = vmax.f32 %v1963, 0.0
    %v2002 = vmax.f32 %v1964, 0.0
    %v2003 = vmax.f32 %v1965, 0.0
    %v2004 = vmax.f32 %v1966, 0.0
    %v2005 = vmax.f32 %v1967, 0.0
    %v2006 = vmax.f32 %v1968, 0.0
    %v2007 = vmax.f32 %v1969, 0.0
    %v2008 = vmax.f32 %v1970, 0.0
    %v2009 = vmax.f32 %v1971, 0.0
    %v2010 = vmax.f32 %v1972, 0.0
    %v2011 = vmax.f32 %v1973, 0.0
    %v2012 = vld [vmem:[%s3] sm:$0xff]
    %v2013 = vld [vmem:[%s3 + $0x8] sm:$0xff]
    %v2014 = vld [vmem:[%s3 + $0x10] sm:$0xff]
    %v2015 = vld [vmem:[%s3 + $0x18] sm:$0xff]
    %v2016 = vld [vmem:[%s3 + $0x20] sm:$0xff]
    %v2017 = vld [vmem:[%s3 + $0x28] sm:$0xff]
    %v2018 = vld [vmem:[%s3 + $0x30] sm:$0xff]
    %v2019 = vld [vmem:[%s3 + $0x38] sm:$0xff]
    %v2020 = vld [vmem:[%s3 + $0x40] sm:$0xff]
    %v2021 = vld [vmem:[%s3 + $0x48] sm:$0xff]
    %v2022 = vld [vmem:[%s3 + $0x50] sm:$0xff]
    %v2023 = vld [vmem:[%s3 + $0x58] sm:$0xff]
    %v2024 = vld [vmem:[%s3 + $0x60] sm:$0xff]
    %v2025 = vld [vmem:[%s3 + $0x68] sm:$0xff]
    %v2026 = vld [vmem:[%s3 + $0x70] sm:$0xff]
    %v2027 = vld [vmem:[%s3 + $0x78] sm:$0xff]
    %v2028 = vld [vmem:[%s4] sm:$0x1]
    %v2030 = vlaneseq
    %v2031 = vshrl.u32 %v2030, 7
    %v2032 = vsub.s32 0, %v2031
    %v2033 = vrot.slane %v2028, %v2032
    %2035 = vmatprep.subr.mxu0 0.0
    %2036 = vmatpush1.msra.mxu0 %v2012
    %2037 = vmatprep.subr.mxu0 0.0
    %2038 = vmatpush1.msra.mxu0 %v2013
    %2039 = vmatprep.subr.mxu0 0.0
    %2040 = vmatpush1.msra.mxu0 %v2014
    %2041 = vmatprep.subr.mxu0 0.0
    %2042 = vmatpush1.msra.mxu0 %v2015
    %2043 = vmatprep.subr.mxu0 0.0
    %2044 = vmatpush1.msra.mxu0 %v2016
    %2045 = vmatprep.subr.mxu0 0.0
    %2046 = vmatpush1.msra.mxu0 %v2017
    %2047 = vmatprep.subr.mxu0 0.0
    %2048 = vmatpush1.msra.mxu0 %v2018
    %2049 = vmatprep.subr.mxu0 0.0
    %2050 = vmatpush1.msra.mxu0 %v2019
    %2051 = vmatprep.subr.mxu0 0.0
    %2052 = vmatpush1.msra.mxu0 %v2020
    %2053 = vmatprep.subr.mxu0 0.0
    %2054 = vmatpush1.msra.mxu0 %v2021
    %2055 = vmatprep.subr.mxu0 0.0
    %2056 = vmatpush1.msra.mxu0 %v2022
    %2057 = vmatprep.subr.mxu0 0.0
    %2058 = vmatpush1.msra.mxu0 %v2023
    %2059 = vmatprep.subr.mxu0 0.0
    %2060 = vmatpush1.msra.mxu0 %v2024
    %2061 = vmatprep.subr.mxu0 0.0
    %2062 = vmatpush1.msra.mxu0 %v2025
    %2063 = vmatprep.subr.mxu0 0.0
    %2064 = vmatpush1.msra.mxu0 %v2026
    %2065 = vmatprep.subr.mxu0 0.0
    %2066 = vmatpush1.msra.mxu0 %v2027
    %2067 = vmatprep.subr.mxu0 0.0
    %2068 = vmatpush1.msra.mxu0 0.0
    %2069 = vmatprep.subr.mxu0 0.0
    %2070 = vmatpush1.msra.mxu0 0.0
    %2071 = vmatprep.subr.mxu0 0.0
    %2072 = vmatpush1.msra.mxu0 0.0
    %2073 = vmatprep.subr.mxu0 0.0
    %2074 = vmatpush1.msra.mxu0 0.0
    %2075 = vmatprep.subr.mxu0 0.0
    %2076 = vmatpush1.msra.mxu0 0.0
    %2077 = vmatprep.subr.mxu0 0.0
    %2078 = vmatpush1.msra.mxu0 0.0
    %2079 = vmatprep.subr.mxu0 0.0
    %2080 = vmatpush1.msra.mxu0 0.0
    %2081 = vmatprep.subr.mxu0 0.0
    %2082 = vmatpush1.msra.mxu0 0.0
    %2083 = vmatprep.subr.mxu0 0.0
    %2084 = vmatpush1.msra.mxu0 0.0
    %2085 = vmatprep.subr.mxu0 0.0
    %2086 = vmatpush1.msra.mxu0 0.0
    %2087 = vmatprep.subr.mxu0 0.0
    %2088 = vmatpush1.msra.mxu0 0.0
    %2089 = vmatprep.subr.mxu0 0.0
    %2090 = vmatpush1.msra.mxu0 0.0
    %2091 = vmatprep.subr.mxu0 0.0
    %2092 = vmatpush1.msra.mxu0 0.0
    %2093 = vmatprep.subr.mxu0 0.0
    %2094 = vmatpush1.msra.mxu0 0.0
    %2095 = vmatprep.subr.mxu0 0.0
    %2096 = vmatpush1.msra.mxu0 0.0
    %2097 = vmatprep.subr.mxu0 0.0
    %2098 = vmatpush1.msra.mxu0 0.0
    %2099 = vmatprep.mubr.f32.mxu0 0.0
    %2100 = vmatmul.mubr.f32.gmra.mrb[0].mxu0 %v1974
    %v2101 = vpop.f32.mrb[0].mxu0
    %v2102 = vadd.f32 %v2033, %v2101
    %v2103 = vpop.f32.mrb[0].mxu0
    %2104 = vmatprep.mubr.f32.mxu0 0.0
    %2105 = vmatmul.mubr.f32.gmra.mrb[0].mxu0 %v1975
    %v2106 = vpop.f32.mrb[0].mxu0
    %v2107 = vadd.f32 %v2033, %v2106
    %v2108 = vpop.f32.mrb[0].mxu0
    %2109 = vmatprep.mubr.f32.mxu0 0.0
    %2110 = vmatmul.mubr.f32.gmra.mrb[0].mxu0 %v1976
    %v2111 = vpop.f32.mrb[0].mxu0
    %v2112 = vadd.f32 %v2033, %v2111
    %v2113 = vpop.f32.mrb[0].mxu0
    %2114 = vmatprep.mubr.f32.mxu0 0.0
    %2115 = vmatmul.mubr.f32.gmra.mrb[0].mxu0 %v1977
    %v2116 = vpop.f32.mrb[0].mxu0
    %v2117 = vadd.f32 %v2033, %v2116
    %v2118 = vpop.f32.mrb[0].mxu0
    %2119 = vmatprep.mubr.f32.mxu0 0.0
    %2120 = vmatmul.mubr.f32.gmra.mrb[0].mxu0 %v1978
    %v2121 = vpop.f32.mrb[0].mxu0
    %v2122 = vadd.f32 %v2033, %v2121
    %v2123 = vpop.f32.mrb[0].mxu0
    %2124 = vmatprep.mubr.f32.mxu0 0.0
    %2125 = vmatmul.mubr.f32.gmra.mrb[0].mxu0 %v1979
    %v2126 = vpop.f32.mrb[0].mxu0
    %v2127 = vadd.f32 %v2033, %v2126
    %v2128 = vpop.f32.mrb[0].mxu0
    %2129 = vmatprep.mubr.f32.mxu0 0.0
    %2130 = vmatmul.mubr.f32.gmra.mrb[0].mxu0 %v1980
    %v2131 = vpop.f32.mrb[0].mxu0
    %v2132 = vadd.f32 %v2033, %v2131
    %v2133 = vpop.f32.mrb[0].mxu0
    %2134 = vmatprep.mubr.f32.mxu0 0.0
    %2135 = vmatmul.mubr.f32.gmra.mrb[0].mxu0 %v1981
    %v2136 = vpop.f32.mrb[0].mxu0
    %v2137 = vadd.f32 %v2033, %v2136
    %v2138 = vpop.f32.mrb[0].mxu0
    %2139 = vmatprep.mubr.f32.mxu0 0.0
    %2140 = vmatmul.mubr.f32.gmra.mrb[0].mxu0 %v1982
    %v2141 = vpop.f32.mrb[0].mxu0
    %v2142 = vadd.f32 %v2033, %v2141
    %v2143 = vpop.f32.mrb[0].mxu0
    %2144 = vmatprep.mubr.f32.mxu0 0.0
    %2145 = vmatmul.mubr.f32.gmra.mrb[0].mxu0 %v1983
    %v2146 = vpop.f32.mrb[0].mxu0
    %v2147 = vadd.f32 %v2033, %v2146
    %v2148 = vpop.f32.mrb[0].mxu0
    %2149 = vmatprep.mubr.f32.mxu0 0.0
    %2150 = vmatmul.mubr.f32.gmra.mrb[0].mxu0 %v1984
    %v2151 = vpop.f32.mrb[0].mxu0
    %v2152 = vadd.f32 %v2033, %v2151
    %v2153 = vpop.f32.mrb[0].mxu0
    %2154 = vmatprep.mubr.f32.mxu0 0.0
    %2155 = vmatmul.mubr.f32.gmra.mrb[0].mxu0 %v1985
    %v2156 = vpop.f32.mrb[0].mxu0
    %v2157 = vadd.f32 %v2033, %v2156
    %v2158 = vpop.f32.mrb[0].mxu0
    %2159 = vmatprep.mubr.f32.mxu0 0.0
    %2160 = vmatmul.mubr.f32.gmra.mrb[0].mxu0 %v1986
    %v2161 = vpop.f32.mrb[0].mxu0
    %v2162 = vadd.f32 %v2033, %v2161
    %v2163 = vpop.f32.mrb[0].mxu0
    %2164 = vmatprep.mubr.f32.mxu0 0.0
    %2165 = vmatmul.mubr.f32.gmra.mrb[0].mxu0 %v1987
    %v2166 = vpop.f32.mrb[0].mxu0
    %v2167 = vadd.f32 %v2033, %v2166
    %v2168 = vpop.f32.mrb[0].mxu0
    %2169 = vmatprep.mubr.f32.mxu0 0.0
    %2170 = vmatmul.mubr.f32.gmra.mrb[0].mxu0 %v1988
    %v2171 = vpop.f32.mrb[0].mxu0
    %v2172 = vadd.f32 %v2033, %v2171
    %v2173 = vpop.f32.mrb[0].mxu0
    %2174 = vmatprep.mubr.f32.mxu0 0.0
    %2175 = vmatmul.mubr.f32.gmra.mrb[0].mxu0 %v1989
    %v2176 = vpop.f32.mrb[0].mxu0
    %v2177 = vadd.f32 %v2033, %v2176
    %v2178 = vpop.f32.mrb[0].mxu0
    %2179 = vmatprep.mubr.f32.mxu0 0.0
    %2180 = vmatmul.mubr.f32.gmra.mrb[0].mxu0 %v1990
    %v2181 = vpop.f32.mrb[0].mxu0
    %v2182 = vadd.f32 %v2033, %v2181
    %v2183 = vpop.f32.mrb[0].mxu0
    %2184 = vmatprep.mubr.f32.mxu0 0.0
    %2185 = vmatmul.mubr.f32.gmra.mrb[0].mxu0 %v1991
    %v2186 = vpop.f32.mrb[0].mxu0
    %v2187 = vadd.f32 %v2033, %v2186
    %v2188 = vpop.f32.mrb[0].mxu0
    %2189 = vmatprep.mubr.f32.mxu0 0.0
    %2190 = vmatmul.mubr.f32.gmra.mrb[0].mxu0 %v1992
    %v2191 = vpop.f32.mrb[0].mxu0
    %v2192 = vadd.f32 %v2033, %v2191
    %v2193 = vpop.f32.mrb[0].mxu0
    %2194 = vmatprep.mubr.f32.mxu0 0.0
    %2195 = vmatmul.mubr.f32.gmra.mrb[0].mxu0 %v1993
    %v2196 = vpop.f32.mrb[0].mxu0
    %v2197 = vadd.f32 %v2033, %v2196
    %v2198 = vpop.f32.mrb[0].mxu0
    %2199 = vmatprep.mubr.f32.mxu0 0.0
    %2200 = vmatmul.mubr.f32.gmra.mrb[0].mxu0 %v1994
    %v2201 = vpop.f32.mrb[0].mxu0
    %v2202 = vadd.f32 %v2033, %v2201
    %v2203 = vpop.f32.mrb[0].mxu0
    %2204 = vmatprep.mubr.f32.mxu0 0.0
    %2205 = vmatmul.mubr.f32.gmra.mrb[0].mxu0 %v1995
    %v2206 = vpop.f32.mrb[0].mxu0
    %v2207 = vadd.f32 %v2033, %v2206
    %v2208 = vpop.f32.mrb[0].mxu0
    %2209 = vmatprep.mubr.f32.mxu0 0.0
    %2210 = vmatmul.mubr.f32.gmra.mrb[0].mxu0 %v1996
    %v2211 = vpop.f32.mrb[0].mxu0
    %v2212 = vadd.f32 %v2033, %v2211
    %v2213 = vpop.f32.mrb[0].mxu0
    %2214 = vmatprep.mubr.f32.mxu0 0.0
    %2215 = vmatmul.mubr.f32.gmra.mrb[0].mxu0 %v1997
    %v2216 = vpop.f32.mrb[0].mxu0
    %v2217 = vadd.f32 %v2033, %v2216
    %v2218 = vpop.f32.mrb[0].mxu0
    %2219 = vmatprep.mubr.f32.mxu0 0.0
    %2220 = vmatmul.mubr.f32.gmra.mrb[0].mxu0 %v1998
    %v2221 = vpop.f32.mrb[0].mxu0
    %v2222 = vadd.f32 %v2033, %v2221
    %v2223 = vpop.f32.mrb[0].mxu0
    %2224 = vmatprep.mubr.f32.mxu0 0.0
    %2225 = vmatmul.mubr.f32.gmra.mrb[0].mxu0 %v1999
    %v2226 = vpop.f32.mrb[0].mxu0
    %v2227 = vadd.f32 %v2033, %v2226
    %v2228 = vpop.f32.mrb[0].mxu0
    %2229 = vmatprep.mubr.f32.mxu0 0.0
    %2230 = vmatmul.mubr.f32.gmra.mrb[0].mxu0 %v2000
    %v2231 = vpop.f32.mrb[0].mxu0
    %v2232 = vadd.f32 %v2033, %v2231
    %v2233 = vpop.f32.mrb[0].mxu0
    %2234 = vmatprep.mubr.f32.mxu0 0.0
    %2235 = vmatmul.mubr.f32.gmra.mrb[0].mxu0 %v2001
    %v2236 = vpop.f32.mrb[0].mxu0
    %v2237 = vadd.f32 %v2033, %v2236
    %v2238 = vpop.f32.mrb[0].mxu0
    %2239 = vmatprep.mubr.f32.mxu0 0.0
    %2240 = vmatmul.mubr.f32.gmra.mrb[0].mxu0 %v2002
    %v2241 = vpop.f32.mrb[0].mxu0
    %v2242 = vadd.f32 %v2033, %v2241
    %v2243 = vpop.f32.mrb[0].mxu0
    %2244 = vmatprep.mubr.f32.mxu0 0.0
    %2245 = vmatmul.mubr.f32.gmra.mrb[0].mxu0 %v2003
    %v2246 = vpop.f32.mrb[0].mxu0
    %v2247 = vadd.f32 %v2033, %v2246
    %v2248 = vpop.f32.mrb[0].mxu0
    %2249 = vmatprep.mubr.f32.mxu0 0.0
    %2250 = vmatmul.mubr.f32.gmra.mrb[0].mxu0 %v2004
    %v2251 = vpop.f32.mrb[0].mxu0
    %v2252 = vadd.f32 %v2033, %v2251
    %v2253 = vpop.f32.mrb[0].mxu0
    %2254 = vmatprep.mubr.f32.mxu0 0.0
    %2255 = vmatmul.mubr.f32.gmra.mrb[0].mxu0 %v2005
    %v2256 = vpop.f32.mrb[0].mxu0
    %v2257 = vadd.f32 %v2033, %v2256
    %v2258 = vpop.f32.mrb[0].mxu0
    %2259 = vmatprep.mubr.f32.mxu0 0.0
    %2260 = vmatmul.mubr.f32.gmra.mrb[0].mxu0 %v2006
    %v2261 = vpop.f32.mrb[0].mxu0
    %v2262 = vadd.f32 %v2033, %v2261
    %v2263 = vpop.f32.mrb[0].mxu0
    %2264 = vmatprep.mubr.f32.mxu0 0.0
    %2265 = vmatmul.mubr.f32.gmra.mrb[0].mxu0 %v2007
    %v2266 = vpop.f32.mrb[0].mxu0
    %v2267 = vadd.f32 %v2033, %v2266
    %v2268 = vpop.f32.mrb[0].mxu0
    %2269 = vmatprep.mubr.f32.mxu0 0.0
    %2270 = vmatmul.mubr.f32.gmra.mrb[0].mxu0 %v2008
    %v2271 = vpop.f32.mrb[0].mxu0
    %v2272 = vadd.f32 %v2033, %v2271
    %v2273 = vpop.f32.mrb[0].mxu0
    %2274 = vmatprep.mubr.f32.mxu0 0.0
    %2275 = vmatmul.mubr.f32.gmra.mrb[0].mxu0 %v2009
    %v2276 = vpop.f32.mrb[0].mxu0
    %v2277 = vadd.f32 %v2033, %v2276
    %v2278 = vpop.f32.mrb[0].mxu0
    %2279 = vmatprep.mubr.f32.mxu0 0.0
    %2280 = vmatmul.mubr.f32.gmra.mrb[0].mxu0 %v2010
    %v2281 = vpop.f32.mrb[0].mxu0
    %v2282 = vadd.f32 %v2033, %v2281
    %v2283 = vpop.f32.mrb[0].mxu0
    %2284 = vmatprep.mubr.f32.mxu0 0.0
    %2285 = vmatmul.mubr.f32.gmra.mrb[0].mxu0 %v2011
    %v2286 = vpop.f32.mrb[0].mxu0
    %v2287 = vadd.f32 %v2033, %v2286
    %v2288 = vpop.f32.mrb[0].mxu0
    %2289 = vdwg.mxu0
    %v2290 = vmax.f32 %v2102, 0.0
    %v2291 = vmax.f32 %v2107, 0.0
    %v2292 = vmax.f32 %v2112, 0.0
    %v2293 = vmax.f32 %v2117, 0.0
    %v2294 = vmax.f32 %v2122, 0.0
    %v2295 = vmax.f32 %v2127, 0.0
    %v2296 = vmax.f32 %v2132, 0.0
    %v2297 = vmax.f32 %v2137, 0.0
    %v2298 = vmax.f32 %v2142, 0.0
    %v2299 = vmax.f32 %v2147, 0.0
    %v2300 = vmax.f32 %v2152, 0.0
    %v2301 = vmax.f32 %v2157, 0.0
    %v2302 = vmax.f32 %v2162, 0.0
    %v2303 = vmax.f32 %v2167, 0.0
    %v2304 = vmax.f32 %v2172, 0.0
    %v2305 = vmax.f32 %v2177, 0.0
    %v2306 = vmax.f32 %v2182, 0.0
    %v2307 = vmax.f32 %v2187, 0.0
    %v2308 = vmax.f32 %v2192, 0.0
    %v2309 = vmax.f32 %v2197, 0.0
    %v2310 = vmax.f32 %v2202, 0.0
    %v2311 = vmax.f32 %v2207, 0.0
    %v2312 = vmax.f32 %v2212, 0.0
    %v2313 = vmax.f32 %v2217, 0.0
    %v2314 = vmax.f32 %v2222, 0.0
    %v2315 = vmax.f32 %v2227, 0.0
    %v2316 = vmax.f32 %v2232, 0.0
    %v2317 = vmax.f32 %v2237, 0.0
    %v2318 = vmax.f32 %v2242, 0.0
    %v2319 = vmax.f32 %v2247, 0.0
    %v2320 = vmax.f32 %v2252, 0.0
    %v2321 = vmax.f32 %v2257, 0.0
    %v2322 = vmax.f32 %v2262, 0.0
    %v2323 = vmax.f32 %v2267, 0.0
    %v2324 = vmax.f32 %v2272, 0.0
    %v2325 = vmax.f32 %v2277, 0.0
    %v2326 = vmax.f32 %v2282, 0.0
    %v2327 = vmax.f32 %v2287, 0.0
    %v2328 = vld [vmem:[%s5] sm:$0xff]
    %v2329 = vld [vmem:[%s5 + $0x8] sm:$0xff]
    %v2330 = vld [vmem:[%s5 + $0x10] sm:$0xff]
    %v2331 = vld [vmem:[%s5 + $0x18] sm:$0xff]
    %v2332 = vld [vmem:[%s5 + $0x20] sm:$0xff]
    %v2333 = vld [vmem:[%s5 + $0x28] sm:$0xff]
    %v2334 = vld [vmem:[%s5 + $0x30] sm:$0xff]
    %v2335 = vld [vmem:[%s5 + $0x38] sm:$0xff]
    %v2336 = vld [vmem:[%s5 + $0x40] sm:$0xff]
    %v2337 = vld [vmem:[%s5 + $0x48] sm:$0xff]
    %v2338 = vld [vmem:[%s5 + $0x50] sm:$0xff]
    %v2339 = vld [vmem:[%s5 + $0x58] sm:$0xff]
    %v2340 = vld [vmem:[%s5 + $0x60] sm:$0xff]
    %v2341 = vld [vmem:[%s5 + $0x68] sm:$0xff]
    %v2342 = vld [vmem:[%s5 + $0x70] sm:$0xff]
    %v2343 = vld [vmem:[%s5 + $0x78] sm:$0xff]
    %v2344 = vld [vmem:[%s6] sm:$0x1]
    %v2346 = vlaneseq
    %v2347 = vshrl.u32 %v2346, 7
    %v2348 = vsub.s32 0, %v2347
    %v2349 = vrot.slane %v2344, %v2348
    %2351 = vmatprep.subr.mxu0 0.0
    %2352 = vmatpush1.msra.mxu0 %v2328
    %2353 = vmatprep.subr.mxu0 0.0
    %2354 = vmatpush1.msra.mxu0 %v2329
    %2355 = vmatprep.subr.mxu0 0.0
    %2356 = vmatpush1.msra.mxu0 %v2330
    %2357 = vmatprep.subr.mxu0 0.0
    %2358 = vmatpush1.msra.mxu0 %v2331
    %2359 = vmatprep.subr.mxu0 0.0
    %2360 = vmatpush1.msra.mxu0 %v2332
    %2361 = vmatprep.subr.mxu0 0.0
    %2362 = vmatpush1.msra.mxu0 %v2333
    %2363 = vmatprep.subr.mxu0 0.0
    %2364 = vmatpush1.msra.mxu0 %v2334
    %2365 = vmatprep.subr.mxu0 0.0
    %2366 = vmatpush1.msra.mxu0 %v2335
    %2367 = vmatprep.subr.mxu0 0.0
    %2368 = vmatpush1.msra.mxu0 %v2336
    %2369 = vmatprep.subr.mxu0 0.0
    %2370 = vmatpush1.msra.mxu0 %v2337
    %2371 = vmatprep.subr.mxu0 0.0
    %2372 = vmatpush1.msra.mxu0 %v2338
    %2373 = vmatprep.subr.mxu0 0.0
    %2374 = vmatpush1.msra.mxu0 %v2339
    %2375 = vmatprep.subr.mxu0 0.0
    %2376 = vmatpush1.msra.mxu0 %v2340
    %2377 = vmatprep.subr.mxu0 0.0
    %2378 = vmatpush1.msra.mxu0 %v2341
    %2379 = vmatprep.subr.mxu0 0.0
    %2380 = vmatpush1.msra.mxu0 %v2342
    %2381 = vmatprep.subr.mxu0 0.0
    %2382 = vmatpush1.msra.mxu0 %v2343
    %2383 = vmatprep.subr.mxu0 0.0
    %2384 = vmatpush1.msra.mxu0 0.0
    %2385 = vmatprep.subr.mxu0 0.0
    %2386 = vmatpush1.msra.mxu0 0.0
    %2387 = vmatprep.subr.mxu0 0.0
    %2388 = vmatpush1.msra.mxu0 0.0
    %2389 = vmatprep.subr.mxu0 0.0
    %2390 = vmatpush1.msra.mxu0 0.0
    %2391 = vmatprep.subr.mxu0 0.0
    %2392 = vmatpush1.msra.mxu0 0.0
    %2393 = vmatprep.subr.mxu0 0.0
    %2394 = vmatpush1.msra.mxu0 0.0
    %2395 = vmatprep.subr.mxu0 0.0
    %2396 = vmatpush1.msra.mxu0 0.0
    %2397 = vmatprep.subr.mxu0 0.0
    %2398 = vmatpush1.msra.mxu0 0.0
    %2399 = vmatprep.subr.mxu0 0.0
    %2400 = vmatpush1.msra.mxu0 0.0
    %2401 = vmatprep.subr.mxu0 0.0
    %2402 = vmatpush1.msra.mxu0 0.0
    %2403 = vmatprep.subr.mxu0 0.0
    %2404 = vmatpush1.msra.mxu0 0.0
    %2405 = vmatprep.subr.mxu0 0.0
    %2406 = vmatpush1.msra.mxu0 0.0
    %2407 = vmatprep.subr.mxu0 0.0
    %2408 = vmatpush1.msra.mxu0 0.0
    %2409 = vmatprep.subr.mxu0 0.0
    %2410 = vmatpush1.msra.mxu0 0.0
    %2411 = vmatprep.subr.mxu0 0.0
    %2412 = vmatpush1.msra.mxu0 0.0
    %2413 = vmatprep.subr.mxu0 0.0
    %2414 = vmatpush1.msra.mxu0 0.0
    %2415 = vmatprep.mubr.f32.mxu0 0.0
    %2416 = vmatmul.mubr.f32.gmra.mrb[0].mxu0 %v2290
    %v2417 = vpop.f32.mrb[0].mxu0
    %v2418 = vadd.f32 %v2349, %v2417
    %v2419 = vpop.f32.mrb[0].mxu0
    %2420 = vmatprep.mubr.f32.mxu0 0.0
    %2421 = vmatmul.mubr.f32.gmra.mrb[0].mxu0 %v2291
    %v2422 = vpop.f32.mrb[0].mxu0
    %v2423 = vadd.f32 %v2349, %v2422
    %v2424 = vpop.f32.mrb[0].mxu0
    %2425 = vmatprep.mubr.f32.mxu0 0.0
    %2426 = vmatmul.mubr.f32.gmra.mrb[0].mxu0 %v2292
    %v2427 = vpop.f32.mrb[0].mxu0
    %v2428 = vadd.f32 %v2349, %v2427
    %v2429 = vpop.f32.mrb[0].mxu0
    %2430 = vmatprep.mubr.f32.mxu0 0.0
    %2431 = vmatmul.mubr.f32.gmra.mrb[0].mxu0 %v2293
    %v2432 = vpop.f32.mrb[0].mxu0
    %v2433 = vadd.f32 %v2349, %v2432
    %v2434 = vpop.f32.mrb[0].mxu0
    %2435 = vmatprep.mubr.f32.mxu0 0.0
    %2436 = vmatmul.mubr.f32.gmra.mrb[0].mxu0 %v2294
    %v2437 = vpop.f32.mrb[0].mxu0
    %v2438 = vadd.f32 %v2349, %v2437
    %v2439 = vpop.f32.mrb[0].mxu0
    %2440 = vmatprep.mubr.f32.mxu0 0.0
    %2441 = vmatmul.mubr.f32.gmra.mrb[0].mxu0 %v2295
    %v2442 = vpop.f32.mrb[0].mxu0
    %v2443 = vadd.f32 %v2349, %v2442
    %v2444 = vpop.f32.mrb[0].mxu0
    %2445 = vmatprep.mubr.f32.mxu0 0.0
    %2446 = vmatmul.mubr.f32.gmra.mrb[0].mxu0 %v2296
    %v2447 = vpop.f32.mrb[0].mxu0
    %v2448 = vadd.f32 %v2349, %v2447
    %v2449 = vpop.f32.mrb[0].mxu0
    %2450 = vmatprep.mubr.f32.mxu0 0.0
    %2451 = vmatmul.mubr.f32.gmra.mrb[0].mxu0 %v2297
    %v2452 = vpop.f32.mrb[0].mxu0
    %v2453 = vadd.f32 %v2349, %v2452
    %v2454 = vpop.f32.mrb[0].mxu0
    %2455 = vmatprep.mubr.f32.mxu0 0.0
    %2456 = vmatmul.mubr.f32.gmra.mrb[0].mxu0 %v2298
    %v2457 = vpop.f32.mrb[0].mxu0
    %v2458 = vadd.f32 %v2349, %v2457
    %v2459 = vpop.f32.mrb[0].mxu0
    %2460 = vmatprep.mubr.f32.mxu0 0.0
    %2461 = vmatmul.mubr.f32.gmra.mrb[0].mxu0 %v2299
    %v2462 = vpop.f32.mrb[0].mxu0
    %v2463 = vadd.f32 %v2349, %v2462
    %v2464 = vpop.f32.mrb[0].mxu0
    %2465 = vmatprep.mubr.f32.mxu0 0.0
    %2466 = vmatmul.mubr.f32.gmra.mrb[0].mxu0 %v2300
    %v2467 = vpop.f32.mrb[0].mxu0
    %v2468 = vadd.f32 %v2349, %v2467
    %v2469 = vpop.f32.mrb[0].mxu0
    %2470 = vmatprep.mubr.f32.mxu0 0.0
    %2471 = vmatmul.mubr.f32.gmra.mrb[0].mxu0 %v2301
    %v2472 = vpop.f32.mrb[0].mxu0
    %v2473 = vadd.f32 %v2349, %v2472
    %v2474 = vpop.f32.mrb[0].mxu0
    %2475 = vmatprep.mubr.f32.mxu0 0.0
    %2476 = vmatmul.mubr.f32.gmra.mrb[0].mxu0 %v2302
    %v2477 = vpop.f32.mrb[0].mxu0
    %v2478 = vadd.f32 %v2349, %v2477
    %v2479 = vpop.f32.mrb[0].mxu0
    %2480 = vmatprep.mubr.f32.mxu0 0.0
    %2481 = vmatmul.mubr.f32.gmra.mrb[0].mxu0 %v2303
    %v2482 = vpop.f32.mrb[0].mxu0
    %v2483 = vadd.f32 %v2349, %v2482
    %v2484 = vpop.f32.mrb[0].mxu0
    %2485 = vmatprep.mubr.f32.mxu0 0.0
    %2486 = vmatmul.mubr.f32.gmra.mrb[0].mxu0 %v2304
    %v2487 = vpop.f32.mrb[0].mxu0
    %v2488 = vadd.f32 %v2349, %v2487
    %v2489 = vpop.f32.mrb[0].mxu0
    %2490 = vmatprep.mubr.f32.mxu0 0.0
    %2491 = vmatmul.mubr.f32.gmra.mrb[0].mxu0 %v2305
    %v2492 = vpop.f32.mrb[0].mxu0
    %v2493 = vadd.f32 %v2349, %v2492
    %v2494 = vpop.f32.mrb[0].mxu0
    %2495 = vmatprep.mubr.f32.mxu0 0.0
    %2496 = vmatmul.mubr.f32.gmra.mrb[0].mxu0 %v2306
    %v2497 = vpop.f32.mrb[0].mxu0
    %v2498 = vadd.f32 %v2349, %v2497
    %v2499 = vpop.f32.mrb[0].mxu0
    %2500 = vmatprep.mubr.f32.mxu0 0.0
    %2501 = vmatmul.mubr.f32.gmra.mrb[0].mxu0 %v2307
    %v2502 = vpop.f32.mrb[0].mxu0
    %v2503 = vadd.f32 %v2349, %v2502
    %v2504 = vpop.f32.mrb[0].mxu0
    %2505 = vmatprep.mubr.f32.mxu0 0.0
    %2506 = vmatmul.mubr.f32.gmra.mrb[0].mxu0 %v2308
    %v2507 = vpop.f32.mrb[0].mxu0
    %v2508 = vadd.f32 %v2349, %v2507
    %v2509 = vpop.f32.mrb[0].mxu0
    %2510 = vmatprep.mubr.f32.mxu0 0.0
    %2511 = vmatmul.mubr.f32.gmra.mrb[0].mxu0 %v2309
    %v2512 = vpop.f32.mrb[0].mxu0
    %v2513 = vadd.f32 %v2349, %v2512
    %v2514 = vpop.f32.mrb[0].mxu0
    %2515 = vmatprep.mubr.f32.mxu0 0.0
    %2516 = vmatmul.mubr.f32.gmra.mrb[0].mxu0 %v2310
    %v2517 = vpop.f32.mrb[0].mxu0
    %v2518 = vadd.f32 %v2349, %v2517
    %v2519 = vpop.f32.mrb[0].mxu0
    %2520 = vmatprep.mubr.f32.mxu0 0.0
    %2521 = vmatmul.mubr.f32.gmra.mrb[0].mxu0 %v2311
    %v2522 = vpop.f32.mrb[0].mxu0
    %v2523 = vadd.f32 %v2349, %v2522
    %v2524 = vpop.f32.mrb[0].mxu0
    %2525 = vmatprep.mubr.f32.mxu0 0.0
    %2526 = vmatmul.mubr.f32.gmra.mrb[0].mxu0 %v2312
    %v2527 = vpop.f32.mrb[0].mxu0
    %v2528 = vadd.f32 %v2349, %v2527
    %v2529 = vpop.f32.mrb[0].mxu0
    %2530 = vmatprep.mubr.f32.mxu0 0.0
    %2531 = vmatmul.mubr.f32.gmra.mrb[0].mxu0 %v2313
    %v2532 = vpop.f32.mrb[0].mxu0
    %v2533 = vadd.f32 %v2349, %v2532
    %v2534 = vpop.f32.mrb[0].mxu0
    %2535 = vmatprep.mubr.f32.mxu0 0.0
    %2536 = vmatmul.mubr.f32.gmra.mrb[0].mxu0 %v2314
    %v2537 = vpop.f32.mrb[0].mxu0
    %v2538 = vadd.f32 %v2349, %v2537
    %v2539 = vpop.f32.mrb[0].mxu0
    %2540 = vmatprep.mubr.f32.mxu0 0.0
    %2541 = vmatmul.mubr.f32.gmra.mrb[0].mxu0 %v2315
    %v2542 = vpop.f32.mrb[0].mxu0
    %v2543 = vadd.f32 %v2349, %v2542
    %v2544 = vpop.f32.mrb[0].mxu0
    %2545 = vmatprep.mubr.f32.mxu0 0.0
    %2546 = vmatmul.mubr.f32.gmra.mrb[0].mxu0 %v2316
    %v2547 = vpop.f32.mrb[0].mxu0
    %v2548 = vadd.f32 %v2349, %v2547
    %v2549 = vpop.f32.mrb[0].mxu0
    %2550 = vmatprep.mubr.f32.mxu0 0.0
    %2551 = vmatmul.mubr.f32.gmra.mrb[0].mxu0 %v2317
    %v2552 = vpop.f32.mrb[0].mxu0
    %v2553 = vadd.f32 %v2349, %v2552
    %v2554 = vpop.f32.mrb[0].mxu0
    %2555 = vmatprep.mubr.f32.mxu0 0.0
    %2556 = vmatmul.mubr.f32.gmra.mrb[0].mxu0 %v2318
    %v2557 = vpop.f32.mrb[0].mxu0
    %v2558 = vadd.f32 %v2349, %v2557
    %v2559 = vpop.f32.mrb[0].mxu0
    %2560 = vmatprep.mubr.f32.mxu0 0.0
    %2561 = vmatmul.mubr.f32.gmra.mrb[0].mxu0 %v2319
    %v2562 = vpop.f32.mrb[0].mxu0
    %v2563 = vadd.f32 %v2349, %v2562
    %v2564 = vpop.f32.mrb[0].mxu0
    %2565 = vmatprep.mubr.f32.mxu0 0.0
    %2566 = vmatmul.mubr.f32.gmra.mrb[0].mxu0 %v2320
    %v2567 = vpop.f32.mrb[0].mxu0
    %v2568 = vadd.f32 %v2349, %v2567
    %v2569 = vpop.f32.mrb[0].mxu0
    %2570 = vmatprep.mubr.f32.mxu0 0.0
    %2571 = vmatmul.mubr.f32.gmra.mrb[0].mxu0 %v2321
    %v2572 = vpop.f32.mrb[0].mxu0
    %v2573 = vadd.f32 %v2349, %v2572
    %v2574 = vpop.f32.mrb[0].mxu0
    %2575 = vmatprep.mubr.f32.mxu0 0.0
    %2576 = vmatmul.mubr.f32.gmra.mrb[0].mxu0 %v2322
    %v2577 = vpop.f32.mrb[0].mxu0
    %v2578 = vadd.f32 %v2349, %v2577
    %v2579 = vpop.f32.mrb[0].mxu0
    %2580 = vmatprep.mubr.f32.mxu0 0.0
    %2581 = vmatmul.mubr.f32.gmra.mrb[0].mxu0 %v2323
    %v2582 = vpop.f32.mrb[0].mxu0
    %v2583 = vadd.f32 %v2349, %v2582
    %v2584 = vpop.f32.mrb[0].mxu0
    %2585 = vmatprep.mubr.f32.mxu0 0.0
    %2586 = vmatmul.mubr.f32.gmra.mrb[0].mxu0 %v2324
    %v2587 = vpop.f32.mrb[0].mxu0
    %v2588 = vadd.f32 %v2349, %v2587
    %v2589 = vpop.f32.mrb[0].mxu0
    %2590 = vmatprep.mubr.f32.mxu0 0.0
    %2591 = vmatmul.mubr.f32.gmra.mrb[0].mxu0 %v2325
    %v2592 = vpop.f32.mrb[0].mxu0
    %v2593 = vadd.f32 %v2349, %v2592
    %v2594 = vpop.f32.mrb[0].mxu0
    %2595 = vmatprep.mubr.f32.mxu0 0.0
    %2596 = vmatmul.mubr.f32.gmra.mrb[0].mxu0 %v2326
    %v2597 = vpop.f32.mrb[0].mxu0
    %v2598 = vadd.f32 %v2349, %v2597
    %v2599 = vpop.f32.mrb[0].mxu0
    %2600 = vmatprep.mubr.f32.mxu0 0.0
    %2601 = vmatmul.mubr.f32.gmra.mrb[0].mxu0 %v2327
    %v2602 = vpop.f32.mrb[0].mxu0
    %v2603 = vadd.f32 %v2349, %v2602
    %v2604 = vpop.f32.mrb[0].mxu0
    %2605 = vdwg.mxu0
    %2606 = vst [vmem:[#allocation2] sm:$0xff] %v2418
    %2607 = vst [vmem:[#allocation2 + $0x8] sm:$0xff] %v2423
    %2608 = vst [vmem:[#allocation2 + $0x10] sm:$0xff] %v2428
    %2609 = vst [vmem:[#allocation2 + $0x18] sm:$0xff] %v2433
    %2610 = vst [vmem:[#allocation2 + $0x20] sm:$0xff] %v2438
    %2611 = vst [vmem:[#allocation2 + $0x28] sm:$0xff] %v2443
    %2612 = vst [vmem:[#allocation2 + $0x30] sm:$0xff] %v2448
    %2613 = vst [vmem:[#allocation2 + $0x38] sm:$0xff] %v2453
    %2614 = vst [vmem:[#allocation2 + $0x40] sm:$0xff] %v2458
    %2615 = vst [vmem:[#allocation2 + $0x48] sm:$0xff] %v2463
    %2616 = vst [vmem:[#allocation2 + $0x50] sm:$0xff] %v2468
    %2617 = vst [vmem:[#allocation2 + $0x58] sm:$0xff] %v2473
    %2618 = vst [vmem:[#allocation2 + $0x60] sm:$0xff] %v2478
    %2619 = vst [vmem:[#allocation2 + $0x68] sm:$0xff] %v2483
    %2620 = vst [vmem:[#allocation2 + $0x70] sm:$0xff] %v2488
    %2621 = vst [vmem:[#allocation2 + $0x78] sm:$0xff] %v2493
    %2622 = vst [vmem:[#allocation2 + $0x80] sm:$0xff] %v2498
    %2623 = vst [vmem:[#allocation2 + $0x88] sm:$0xff] %v2503
    %2624 = vst [vmem:[#allocation2 + $0x90] sm:$0xff] %v2508
    %2625 = vst [vmem:[#allocation2 + $0x98] sm:$0xff] %v2513
    %2626 = vst [vmem:[#allocation2 + $0xa0] sm:$0xff] %v2518
    %2627 = vst [vmem:[#allocation2 + $0xa8] sm:$0xff] %v2523
    %2628 = vst [vmem:[#allocation2 + $0xb0] sm:$0xff] %v2528
    %2629 = vst [vmem:[#allocation2 + $0xb8] sm:$0xff] %v2533
    %2630 = vst [vmem:[#allocation2 + $0xc0] sm:$0xff] %v2538
    %2631 = vst [vmem:[#allocation2 + $0xc8] sm:$0xff] %v2543
    %2632 = vst [vmem:[#allocation2 + $0xd0] sm:$0xff] %v2548
    %2633 = vst [vmem:[#allocation2 + $0xd8] sm:$0xff] %v2553
    %2634 = vst [vmem:[#allocation2 + $0xe0] sm:$0xff] %v2558
    %2635 = vst [vmem:[#allocation2 + $0xe8] sm:$0xff] %v2563
    %2636 = vst [vmem:[#allocation2 + $0xf0] sm:$0xff] %v2568
    %2637 = vst [vmem:[#allocation2 + $0xf8] sm:$0xff] %v2573
    %2638 = vst [vmem:[#allocation2 + $0x100] sm:$0xff] %v2578
    %2639 = vst [vmem:[#allocation2 + $0x108] sm:$0xff] %v2583
    %2640 = vst [vmem:[#allocation2 + $0x110] sm:$0xff] %v2588
    %2641 = vst [vmem:[#allocation2 + $0x118] sm:$0xff] %v2593
    %2642 = vst [vmem:[#allocation2 + $0x120] sm:$0xff] %v2598
    %2643 = vst [vmem:[#allocation2 + $0x128] sm:$0xff] %v2603
    // Predicated region
    $region30: #{tpu_custom_call.1} parent=1 // pred_check
      _
    $region31: #{tpu_custom_call.1} parent=1 // pred_check_branch
      %2645 = sbr.rel (0) target = $region33
    $region32: #{tpu_custom_call.1} parent=1 // pred_region
      %s2647 = ssub.s32 4864, 4864
      %2648 = vsyncadd [#allocation3], %s2647
      %s2649 = sshll.u32 [#allocation2], 4
      %s2650 = int_to_ptr.vmem [resolvable:$true] %s2649
      %2655 = dma.vmem_to_hbm [thread:$0]  %s2650, 4864, %s7, [#allocation3], 128, 128, 8
    $region33: #{tpu_custom_call.1} parent=1 // pred_fallthru
      _
    // Predicated region
    $region34: #{tpu_custom_call.1} parent=1 // pred_check
      _
    $region35: #{tpu_custom_call.1} parent=1 // pred_check_branch
      %2657 = sbr.rel (0) target = $region37
    $region36: #{tpu_custom_call.1} parent=1 // pred_region
      %2658 = dma.done [#allocation3], 4864
    $region37: #{tpu_custom_call.1} parent=1 // pred_fallthru
      _
    %2659 = vsyncpa [#allocation3], 1

</llo_original>
